<compile_context>
chip_gen: v5e
topology: v5e:2x2
jax: 0.10.0
libtpu: 0.0.40
codegen_flags: <defaults>
</compile_context>

<pallas_src>
import functools

import jax
import jax.numpy as jnp
from jax.experimental import pallas as pl
from jax.experimental.pallas import tpu as pltpu


def _lidar_kernel(x_ref, w1_ref, b1_ref, w2_ref, b2_ref, w3_ref, b3_ref,
                  wl1_ref, bl1_ref, wl2_ref, bl2_ref, out_ref,
                  s1, s2, s3, *, kernel_size):
    K = kernel_size
    pad = (K - 1) // 2
    L = x_ref.shape[0]
    bf16 = jnp.bfloat16

    def im2col(h):
        """(Lc, Cin) -> (Lc, K*Cin): circular pad once, lane-concat K shifted
        views; column block t holds h[(i + t - pad) % Lc, :]."""
        Lc = h.shape[0]
        if pad > 0:
            hp = jnp.concatenate([h[Lc - pad:, :], h, h[:pad, :]], axis=0)
        else:
            hp = h
        cols = [hp[t:t + Lc, :] for t in range(K)]
        return cols[0] if K == 1 else jnp.concatenate(cols, axis=1)

    # ---- Conv1d(1, C0, k, circular) + ReLU : one (L, K) @ (K, C0) matmul
    y1 = jnp.dot(im2col(x_ref[...]).astype(bf16), w1_ref[...],
                 preferred_element_type=jnp.float32)
    s1[...] = jnp.maximum(y1 + b1_ref[...], 0.0)

    # ---- MaxPool1d(2, 2): strided sublane reads from the staging ref
    L1 = L // 2
    h1 = jnp.maximum(s1[pl.ds(0, L1, 2), :], s1[pl.ds(1, L1, 2), :])

    # ---- Conv1d(C0, C1, k, circular) + ReLU : one (L1, K*C0) @ (K*C0, C1)
    y2 = jnp.dot(im2col(h1).astype(bf16), w2_ref[...],
                 preferred_element_type=jnp.float32)
    s2[...] = jnp.maximum(y2 + b2_ref[...], 0.0)

    # ---- MaxPool1d(4, 4)
    L2 = L1 // 4
    h2 = s2[pl.ds(0, L2, 4), :]
    for j in range(1, 4):
        h2 = jnp.maximum(h2, s2[pl.ds(j, L2, 4), :])

    # ---- Conv1d(C1, C2, k, circular) + ReLU : one (L2, K*C1) @ (K*C1, C2)
    y3 = jnp.dot(im2col(h2).astype(bf16), w3_ref[...],
                 preferred_element_type=jnp.float32)
    s3[...] = jnp.maximum(y3 + b3_ref[...], 0.0)

    # ---- MaxPool1d(4, 4)
    L3 = L2 // 4
    h3 = s3[pl.ds(0, L3, 4), :]
    for j in range(1, 4):
        h3 = jnp.maximum(h3, s3[pl.ds(j, L3, 4), :])

    # ---- Flatten + Linear(len_flat, 40) + ReLU : single 128-deep matmul.
    # flat[0, l*C2 + c] = h3[l, c]; wl1_ref rows are pre-permuted to match.
    flat = jnp.concatenate([h3[l:l + 1, :] for l in range(L3)], axis=1)
    f = jnp.dot(flat.astype(bf16), wl1_ref[...],
                preferred_element_type=jnp.float32)
    f = jnp.maximum(f + bl1_ref[...], 0.0)                 # (1, 40)

    # ---- Linear(40, 1) + ReLU
    o = jnp.dot(f.astype(bf16), wl2_ref[...],
                preferred_element_type=jnp.float32)
    out_ref[...] = jnp.maximum(o + bl2_ref[...], 0.0).astype(out_ref.dtype)


def lidar_cnn_diff(x, params, *, kernel_size=5):
    """x: (B, 1, L) float32 (PyTorch NCW).  Returns (B, 1) float32."""
    B, cin, L = x.shape
    assert cin == 1
    # TODO(synk): MaxPool1d ceil_mode padding for L not divisible by 32 is not
    # implemented; wrapper requires exact divisibility (pools are then exact).
    assert L % 32 == 0
    C0 = params["w1"].shape[0]
    C1 = params["w2"].shape[0]
    C2 = params["w3"].shape[0]
    K = kernel_size
    L1, L2, L3 = L // 2, L // 8, L // 32

    # ---- glue: layout / weight reshuffles (plain JAX, no compute) ----
    wdt = jnp.bfloat16
    x_l = jnp.transpose(x, (0, 2, 1))                              # (B, L, 1)
    # conv weights (Cout,Cin,K) -> (K*Cin, Cout), row = t*Cin + c (im2col order)
    w1_c = jnp.transpose(params["w1"], (2, 1, 0)).reshape(K * 1, C0).astype(wdt)
    w2_c = jnp.transpose(params["w2"], (2, 1, 0)).reshape(K * C0, C1).astype(wdt)
    w3_c = jnp.transpose(params["w3"], (2, 1, 0)).reshape(K * C1, C2).astype(wdt)
    # PyTorch flatten index = c*L3 + l ; kernel flat index = l*C2 + c
    wl1_c = jnp.transpose(params["wl1"].reshape(40, C2, L3),
                          (2, 1, 0)).reshape(L3 * C2, 40).astype(wdt)
    wl2_c = params["wl2"].T.astype(wdt)                            # (40, 1)
    b1_t = params["b1"].reshape(1, C0)
    b2_t = params["b2"].reshape(1, C1)
    b3_t = params["b3"].reshape(1, C2)
    bl1_t = params["bl1"].reshape(1, 40)
    bl2_t = params["bl2"].reshape(1, 1)

    def full(a):   # whole-array block, resident in VMEM across the grid
        return pl.BlockSpec(a.shape, lambda b: (0,) * a.ndim)

    kernel = functools.partial(_lidar_kernel, kernel_size=K)
    out = pl.pallas_call(
        kernel,
        out_shape=jax.ShapeDtypeStruct((B, 1, 1), jnp.float32),
        grid=(B,),
        in_specs=[pl.BlockSpec((None, L, 1), lambda b: (b, 0, 0)),
                  full(w1_c), full(b1_t),
                  full(w2_c), full(b2_t),
                  full(w3_c), full(b3_t),
                  full(wl1_c), full(bl1_t),
                  full(wl2_c), full(bl2_t)],
        out_specs=pl.BlockSpec((None, 1, 1), lambda b: (b, 0, 0)),
        scratch_shapes=[
            pltpu.VMEM((L, C0), jnp.float32),    # conv1 output (pool staging)
            pltpu.VMEM((L1, C1), jnp.float32),   # conv2 output (pool staging)
            pltpu.VMEM((L2, C2), jnp.float32),   # conv3 output (pool staging)
        ],
        compiler_params=pltpu.CompilerParams(
            dimension_semantics=("parallel",)),  # 2-TC batch split on v7x
    )(x_l, w1_c, b1_t, w2_c, b2_t, w3_c, b3_t, wl1_c, bl1_t, wl2_c, bl2_t)
    return out.reshape(B, 1)


def init_params(key, n_sensors, output_channels, kernel_size=5):
    L = n_sensors * 2
    C0, C1, C2 = output_channels
    K = kernel_size
    len_flat = (-(-L // 32)) * C2
    ks = jax.random.split(key, 10)

    def w(k, shape, fan_in):
        return jax.random.normal(k, shape, jnp.float32) / jnp.sqrt(float(fan_in))

    return dict(
        w1=w(ks[0], (C0, 1, K), K),             b1=w(ks[1], (C0,), K),
        w2=w(ks[2], (C1, C0, K), C0 * K),       b2=w(ks[3], (C1,), C0 * K),
        w3=w(ks[4], (C2, C1, K), C1 * K),       b3=w(ks[5], (C2,), C1 * K),
        wl1=w(ks[6], (40, len_flat), len_flat), bl1=w(ks[7], (40,), len_flat),
        wl2=w(ks[8], (1, 40), 40),              bl2=w(ks[9], (1,), 40),
    )


def _reference(x, p, kernel_size=5):
    """Plain-JAX (f32) reproduction of the PyTorch forward (NCW layout)."""
    pad = (kernel_size - 1) // 2

    def conv1d_circ(h, w, b):
        K = w.shape[-1]
        y = jnp.zeros((h.shape[0], w.shape[0], h.shape[-1]), jnp.float32)
        for t in range(K):
            hs = jnp.roll(h, pad - t, axis=-1)                 # circular pad
            y = y + jnp.einsum("bcl,oc->bol", hs, w[:, :, t])
        return y + b[None, :, None]

    def maxpool(h, k):
        B, C, L = h.shape
        return h.reshape(B, C, L // k, k).max(axis=-1)

    h = maxpool(jax.nn.relu(conv1d_circ(x, p["w1"], p["b1"])), 2)
    h = maxpool(jax.nn.relu(conv1d_circ(h, p["w2"], p["b2"])), 4)
    h = maxpool(jax.nn.relu(conv1d_circ(h, p["w3"], p["b3"])), 4)
    flat = h.reshape(h.shape[0], -1)                           # channel-major
    f = jax.nn.relu(jnp.dot(flat, p["wl1"].T) + p["bl1"])
    return jax.nn.relu(jnp.dot(f, p["wl2"].T) + p["bl2"])


if __name__ == "__main__":
    n_sensors = 64                 # input_features = 128
    output_channels = [8, 16, 32]
    B = 2
    L = n_sensors * 2

    key = jax.random.PRNGKey(0)
    kp, kx = jax.random.split(key)
    params = init_params(kp, n_sensors, output_channels)
    x = jax.random.normal(kx, (B, 1, L), jnp.float32)

    out = jax.block_until_ready(lidar_cnn_diff(x, params))
    ref = jax.block_until_ready(_reference(x, params))

    assert out.shape == (B, 1)
    # bf16 MXU operands (per perf review) vs. an f32 reference: tolerance 2e-2.
    assert bool(jnp.allclose(out, ref, atol=2e-2, rtol=2e-2))
    print("KERNEL_OK")
</pallas_src>

<mosaic_0001>
module attributes {stable_mosaic.version = 11 : i64} {
  func.func @_lidar_kernel(%arg0: i32, %arg1: memref<1x128x1xf32, #tpu.memory_space<vmem>>, %arg2: memref<5x8xbf16, #tpu.memory_space<vmem>>, %arg3: memref<1x8xf32, #tpu.memory_space<vmem>>, %arg4: memref<40x16xbf16, #tpu.memory_space<vmem>>, %arg5: memref<1x16xf32, #tpu.memory_space<vmem>>, %arg6: memref<80x32xbf16, #tpu.memory_space<vmem>>, %arg7: memref<1x32xf32, #tpu.memory_space<vmem>>, %arg8: memref<128x40xbf16, #tpu.memory_space<vmem>>, %arg9: memref<1x40xf32, #tpu.memory_space<vmem>>, %arg10: memref<40x1xbf16, #tpu.memory_space<vmem>>, %arg11: memref<1x1xf32, #tpu.memory_space<vmem>>, %arg12: memref<1x1x1xf32, #tpu.memory_space<vmem>>, %arg13: memref<128x8xf32, #tpu.memory_space<vmem>>, %arg14: memref<64x16xf32, #tpu.memory_space<vmem>>, %arg15: memref<16x32xf32, #tpu.memory_space<vmem>>) attributes {dimension_semantics = [#tpu.dimension_semantics<parallel>], iteration_bounds = array<i64: 2>, scalar_prefetch = 0 : i64, scratch_operands = 3 : i64, tpu.core_type = #tpu.core_type<tc>, window_params = [{transform_indices = @transform_0, window_bounds = array<i64: 1, 128, 1>}, {pipeline_mode = #tpu.pipeline_mode<synchronous>, transform_indices = @transform_1, window_bounds = array<i64: 5, 8>}, {pipeline_mode = #tpu.pipeline_mode<synchronous>, transform_indices = @transform_2, window_bounds = array<i64: 1, 8>}, {pipeline_mode = #tpu.pipeline_mode<synchronous>, transform_indices = @transform_3, window_bounds = array<i64: 40, 16>}, {pipeline_mode = #tpu.pipeline_mode<synchronous>, transform_indices = @transform_4, window_bounds = array<i64: 1, 16>}, {pipeline_mode = #tpu.pipeline_mode<synchronous>, transform_indices = @transform_5, window_bounds = array<i64: 80, 32>}, {pipeline_mode = #tpu.pipeline_mode<synchronous>, transform_indices = @transform_6, window_bounds = array<i64: 1, 32>}, {pipeline_mode = #tpu.pipeline_mode<synchronous>, transform_indices = @transform_7, window_bounds = array<i64: 128, 40>}, {pipeline_mode = #tpu.pipeline_mode<synchronous>, transform_indices = @transform_8, window_bounds = array<i64: 1, 40>}, {pipeline_mode = #tpu.pipeline_mode<synchronous>, transform_indices = @transform_9, window_bounds = array<i64: 40, 1>}, {pipeline_mode = #tpu.pipeline_mode<synchronous>, transform_indices = @transform_10, window_bounds = array<i64: 1, 1>}, {transform_indices = @transform_11, window_bounds = array<i64: 1, 1, 1>}]} {
    %c0 = arith.constant 0 : index
    %c0_0 = arith.constant 0 : index
    %c0_1 = arith.constant 0 : index
    %0 = vector.load %arg1[%c0, %c0_0, %c0_1] : memref<1x128x1xf32, #tpu.memory_space<vmem>>, vector<1x128x1xf32>
    %1 = vector.shape_cast %0 : vector<1x128x1xf32> to vector<128x1xf32>
    %2 = vector.extract_strided_slice %1 {offsets = [126, 0], sizes = [2, 1], strides = [1, 1]} : vector<128x1xf32> to vector<2x1xf32>
    %3 = vector.extract_strided_slice %1 {offsets = [0, 0], sizes = [2, 1], strides = [1, 1]} : vector<128x1xf32> to vector<2x1xf32>
    %4 = tpu.concatenate %2, %1, %3 in 0 : vector<2x1xf32>, vector<128x1xf32>, vector<2x1xf32> -> vector<132x1xf32>
    %5 = vector.extract_strided_slice %4 {offsets = [0, 0], sizes = [128, 1], strides = [1, 1]} : vector<132x1xf32> to vector<128x1xf32>
    %6 = vector.extract_strided_slice %4 {offsets = [1, 0], sizes = [128, 1], strides = [1, 1]} : vector<132x1xf32> to vector<128x1xf32>
    %7 = vector.extract_strided_slice %4 {offsets = [2, 0], sizes = [128, 1], strides = [1, 1]} : vector<132x1xf32> to vector<128x1xf32>
    %8 = vector.extract_strided_slice %4 {offsets = [3, 0], sizes = [128, 1], strides = [1, 1]} : vector<132x1xf32> to vector<128x1xf32>
    %9 = vector.extract_strided_slice %4 {offsets = [4, 0], sizes = [128, 1], strides = [1, 1]} : vector<132x1xf32> to vector<128x1xf32>
    %10 = tpu.concatenate %5, %6, %7, %8, %9 in 1 : vector<128x1xf32>, vector<128x1xf32>, vector<128x1xf32>, vector<128x1xf32>, vector<128x1xf32> -> vector<128x5xf32>
    %11 = arith.truncf %10 : vector<128x5xf32> to vector<128x5xbf16>
    %c0_2 = arith.constant 0 : index
    %c0_3 = arith.constant 0 : index
    %12 = vector.load %arg2[%c0_2, %c0_3] : memref<5x8xbf16, #tpu.memory_space<vmem>>, vector<5x8xbf16>
    %cst = arith.constant dense<0.000000e+00> : vector<128x8xf32>
    %13 = tpu.matmul %11, %12, %cst {dimension_numbers = #tpu.dot_dimension_numbers<[1], [0], [0], [1], [0, 0, 1, 1], [], []>} : vector<128x5xbf16>, vector<5x8xbf16>, vector<128x8xf32> -> vector<128x8xf32>
    %c0_4 = arith.constant 0 : index
    %c0_5 = arith.constant 0 : index
    %14 = vector.load %arg3[%c0_4, %c0_5] : memref<1x8xf32, #tpu.memory_space<vmem>>, vector<1x8xf32>
    %15 = vector.broadcast %14 : vector<1x8xf32> to vector<128x8xf32>
    %16 = arith.addf %13, %15 : vector<128x8xf32>
    %cst_6 = arith.constant 0.000000e+00 : f32
    %17 = vector.broadcast %cst_6 : f32 to vector<128x8xf32>
    %18 = arith.maximumf %16, %17 : vector<128x8xf32>
    %c0_7 = arith.constant 0 : index
    %c0_8 = arith.constant 0 : index
    %19 = vector.load %arg13[%c0_7, %c0_8] : memref<128x8xf32, #tpu.memory_space<vmem>>, vector<128x8xf32>
    tpu.vector_store %arg13[%c0_7, %c0_8], %18 {strides = array<i32>} : memref<128x8xf32, #tpu.memory_space<vmem>>, vector<128x8xf32>,
    %c0_9 = arith.constant 0 : index
    %c0_10 = arith.constant 0 : index
    %20 = tpu.strided_load %arg13[%c0_9, %c0_10] {strides = array<i32: 2, 1>} : memref<128x8xf32, #tpu.memory_space<vmem>>, vector<64x8xf32>
    %c1 = arith.constant 1 : index
    %c0_11 = arith.constant 0 : index
    %21 = tpu.strided_load %arg13[%c1, %c0_11] {strides = array<i32: 2, 1>} : memref<128x8xf32, #tpu.memory_space<vmem>>, vector<64x8xf32>
    %22 = arith.maximumf %20, %21 : vector<64x8xf32>
    %23 = vector.extract_strided_slice %22 {offsets = [62, 0], sizes = [2, 8], strides = [1, 1]} : vector<64x8xf32> to vector<2x8xf32>
    %24 = vector.extract_strided_slice %22 {offsets = [0, 0], sizes = [2, 8], strides = [1, 1]} : vector<64x8xf32> to vector<2x8xf32>
    %25 = tpu.concatenate %23, %22, %24 in 0 : vector<2x8xf32>, vector<64x8xf32>, vector<2x8xf32> -> vector<68x8xf32>
    %26 = vector.extract_strided_slice %25 {offsets = [0, 0], sizes = [64, 8], strides = [1, 1]} : vector<68x8xf32> to vector<64x8xf32>
    %27 = vector.extract_strided_slice %25 {offsets = [1, 0], sizes = [64, 8], strides = [1, 1]} : vector<68x8xf32> to vector<64x8xf32>
    %28 = vector.extract_strided_slice %25 {offsets = [2, 0], sizes = [64, 8], strides = [1, 1]} : vector<68x8xf32> to vector<64x8xf32>
    %29 = vector.extract_strided_slice %25 {offsets = [3, 0], sizes = [64, 8], strides = [1, 1]} : vector<68x8xf32> to vector<64x8xf32>
    %30 = vector.extract_strided_slice %25 {offsets = [4, 0], sizes = [64, 8], strides = [1, 1]} : vector<68x8xf32> to vector<64x8xf32>
    %31 = tpu.concatenate %26, %27, %28, %29, %30 in 1 : vector<64x8xf32>, vector<64x8xf32>, vector<64x8xf32>, vector<64x8xf32>, vector<64x8xf32> -> vector<64x40xf32>
    %32 = arith.truncf %31 : vector<64x40xf32> to vector<64x40xbf16>
    %c0_12 = arith.constant 0 : index
    %c0_13 = arith.constant 0 : index
    %33 = vector.load %arg4[%c0_12, %c0_13] : memref<40x16xbf16, #tpu.memory_space<vmem>>, vector<40x16xbf16>
    %cst_14 = arith.constant dense<0.000000e+00> : vector<64x16xf32>
    %34 = tpu.matmul %32, %33, %cst_14 {dimension_numbers = #tpu.dot_dimension_numbers<[1], [0], [0], [1], [0, 0, 1, 1], [], []>} : vector<64x40xbf16>, vector<40x16xbf16>, vector<64x16xf32> -> vector<64x16xf32>
    %c0_15 = arith.constant 0 : index
    %c0_16 = arith.constant 0 : index
    %35 = vector.load %arg5[%c0_15, %c0_16] : memref<1x16xf32, #tpu.memory_space<vmem>>, vector<1x16xf32>
    %36 = vector.broadcast %35 : vector<1x16xf32> to vector<64x16xf32>
    %37 = arith.addf %34, %36 : vector<64x16xf32>
    %cst_17 = arith.constant 0.000000e+00 : f32
    %38 = vector.broadcast %cst_17 : f32 to vector<64x16xf32>
    %39 = arith.maximumf %37, %38 : vector<64x16xf32>
    %c0_18 = arith.constant 0 : index
    %c0_19 = arith.constant 0 : index
    %40 = vector.load %arg14[%c0_18, %c0_19] : memref<64x16xf32, #tpu.memory_space<vmem>>, vector<64x16xf32>
    tpu.vector_store %arg14[%c0_18, %c0_19], %39 {strides = array<i32>} : memref<64x16xf32, #tpu.memory_space<vmem>>, vector<64x16xf32>,
    %c0_20 = arith.constant 0 : index
    %c0_21 = arith.constant 0 : index
    %41 = tpu.strided_load %arg14[%c0_20, %c0_21] {strides = array<i32: 4, 1>} : memref<64x16xf32, #tpu.memory_space<vmem>>, vector<16x16xf32>
    %c1_22 = arith.constant 1 : index
    %c0_23 = arith.constant 0 : index
    %42 = tpu.strided_load %arg14[%c1_22, %c0_23] {strides = array<i32: 4, 1>} : memref<64x16xf32, #tpu.memory_space<vmem>>, vector<16x16xf32>
    %43 = arith.maximumf %41, %42 : vector<16x16xf32>
    %c2 = arith.constant 2 : index
    %c0_24 = arith.constant 0 : index
    %44 = tpu.strided_load %arg14[%c2, %c0_24] {strides = array<i32: 4, 1>} : memref<64x16xf32, #tpu.memory_space<vmem>>, vector<16x16xf32>
    %45 = arith.maximumf %43, %44 : vector<16x16xf32>
    %c3 = arith.constant 3 : index
    %c0_25 = arith.constant 0 : index
    %46 = tpu.strided_load %arg14[%c3, %c0_25] {strides = array<i32: 4, 1>} : memref<64x16xf32, #tpu.memory_space<vmem>>, vector<16x16xf32>
    %47 = arith.maximumf %45, %46 : vector<16x16xf32>
    %48 = vector.extract_strided_slice %47 {offsets = [14, 0], sizes = [2, 16], strides = [1, 1]} : vector<16x16xf32> to vector<2x16xf32>
    %49 = vector.extract_strided_slice %47 {offsets = [0, 0], sizes = [2, 16], strides = [1, 1]} : vector<16x16xf32> to vector<2x16xf32>
    %50 = tpu.concatenate %48, %47, %49 in 0 : vector<2x16xf32>, vector<16x16xf32>, vector<2x16xf32> -> vector<20x16xf32>
    %51 = vector.extract_strided_slice %50 {offsets = [0, 0], sizes = [16, 16], strides = [1, 1]} : vector<20x16xf32> to vector<16x16xf32>
    %52 = vector.extract_strided_slice %50 {offsets = [1, 0], sizes = [16, 16], strides = [1, 1]} : vector<20x16xf32> to vector<16x16xf32>
    %53 = vector.extract_strided_slice %50 {offsets = [2, 0], sizes = [16, 16], strides = [1, 1]} : vector<20x16xf32> to vector<16x16xf32>
    %54 = vector.extract_strided_slice %50 {offsets = [3, 0], sizes = [16, 16], strides = [1, 1]} : vector<20x16xf32> to vector<16x16xf32>
    %55 = vector.extract_strided_slice %50 {offsets = [4, 0], sizes = [16, 16], strides = [1, 1]} : vector<20x16xf32> to vector<16x16xf32>
    %56 = tpu.concatenate %51, %52, %53, %54, %55 in 1 : vector<16x16xf32>, vector<16x16xf32>, vector<16x16xf32>, vector<16x16xf32>, vector<16x16xf32> -> vector<16x80xf32>
    %57 = arith.truncf %56 : vector<16x80xf32> to vector<16x80xbf16>
    %c0_26 = arith.constant 0 : index
    %c0_27 = arith.constant 0 : index
    %58 = vector.load %arg6[%c0_26, %c0_27] : memref<80x32xbf16, #tpu.memory_space<vmem>>, vector<80x32xbf16>
    %cst_28 = arith.constant dense<0.000000e+00> : vector<16x32xf32>
    %59 = tpu.matmul %57, %58, %cst_28 {dimension_numbers = #tpu.dot_dimension_numbers<[1], [0], [0], [1], [0, 0, 1, 1], [], []>} : vector<16x80xbf16>, vector<80x32xbf16>, vector<16x32xf32> -> vector<16x32xf32>
    %c0_29 = arith.constant 0 : index
    %c0_30 = arith.constant 0 : index
    %60 = vector.load %arg7[%c0_29, %c0_30] : memref<1x32xf32, #tpu.memory_space<vmem>>, vector<1x32xf32>
    %61 = vector.broadcast %60 : vector<1x32xf32> to vector<16x32xf32>
    %62 = arith.addf %59, %61 : vector<16x32xf32>
    %cst_31 = arith.constant 0.000000e+00 : f32
    %63 = vector.broadcast %cst_31 : f32 to vector<16x32xf32>
    %64 = arith.maximumf %62, %63 : vector<16x32xf32>
    %c0_32 = arith.constant 0 : index
    %c0_33 = arith.constant 0 : index
    %65 = vector.load %arg15[%c0_32, %c0_33] : memref<16x32xf32, #tpu.memory_space<vmem>>, vector<16x32xf32>
    tpu.vector_store %arg15[%c0_32, %c0_33], %64 {strides = array<i32>} : memref<16x32xf32, #tpu.memory_space<vmem>>, vector<16x32xf32>,
    %c0_34 = arith.constant 0 : index
    %c0_35 = arith.constant 0 : index
    %66 = tpu.strided_load %arg15[%c0_34, %c0_35] {strides = array<i32: 4, 1>} : memref<16x32xf32, #tpu.memory_space<vmem>>, vector<4x32xf32>
    %c1_36 = arith.constant 1 : index
    %c0_37 = arith.constant 0 : index
    %67 = tpu.strided_load %arg15[%c1_36, %c0_37] {strides = array<i32: 4, 1>} : memref<16x32xf32, #tpu.memory_space<vmem>>, vector<4x32xf32>
    %68 = arith.maximumf %66, %67 : vector<4x32xf32>
    %c2_38 = arith.constant 2 : index
    %c0_39 = arith.constant 0 : index
    %69 = tpu.strided_load %arg15[%c2_38, %c0_39] {strides = array<i32: 4, 1>} : memref<16x32xf32, #tpu.memory_space<vmem>>, vector<4x32xf32>
    %70 = arith.maximumf %68, %69 : vector<4x32xf32>
    %c3_40 = arith.constant 3 : index
    %c0_41 = arith.constant 0 : index
    %71 = tpu.strided_load %arg15[%c3_40, %c0_41] {strides = array<i32: 4, 1>} : memref<16x32xf32, #tpu.memory_space<vmem>>, vector<4x32xf32>
    %72 = arith.maximumf %70, %71 : vector<4x32xf32>
    %73 = vector.extract_strided_slice %72 {offsets = [0, 0], sizes = [1, 32], strides = [1, 1]} : vector<4x32xf32> to vector<1x32xf32>
    %74 = vector.extract_strided_slice %72 {offsets = [1, 0], sizes = [1, 32], strides = [1, 1]} : vector<4x32xf32> to vector<1x32xf32>
    %75 = vector.extract_strided_slice %72 {offsets = [2, 0], sizes = [1, 32], strides = [1, 1]} : vector<4x32xf32> to vector<1x32xf32>
    %76 = vector.extract_strided_slice %72 {offsets = [3, 0], sizes = [1, 32], strides = [1, 1]} : vector<4x32xf32> to vector<1x32xf32>
    %77 = tpu.concatenate %73, %74, %75, %76 in 1 : vector<1x32xf32>, vector<1x32xf32>, vector<1x32xf32>, vector<1x32xf32> -> vector<1x128xf32>
    %78 = arith.truncf %77 : vector<1x128xf32> to vector<1x128xbf16>
    %c0_42 = arith.constant 0 : index
    %c0_43 = arith.constant 0 : index
    %79 = vector.load %arg8[%c0_42, %c0_43] : memref<128x40xbf16, #tpu.memory_space<vmem>>, vector<128x40xbf16>
    %cst_44 = arith.constant dense<0.000000e+00> : vector<1x40xf32>
    %80 = tpu.matmul %78, %79, %cst_44 {dimension_numbers = #tpu.dot_dimension_numbers<[1], [0], [0], [1], [0, 0, 1, 1], [], []>} : vector<1x128xbf16>, vector<128x40xbf16>, vector<1x40xf32> -> vector<1x40xf32>
    %c0_45 = arith.constant 0 : index
    %c0_46 = arith.constant 0 : index
    %81 = vector.load %arg9[%c0_45, %c0_46] : memref<1x40xf32, #tpu.memory_space<vmem>>, vector<1x40xf32>
    %82 = arith.addf %80, %81 : vector<1x40xf32>
    %cst_47 = arith.constant 0.000000e+00 : f32
    %83 = vector.broadcast %cst_47 : f32 to vector<1x40xf32>
    %84 = arith.maximumf %82, %83 : vector<1x40xf32>
    %85 = arith.truncf %84 : vector<1x40xf32> to vector<1x40xbf16>
    %c0_48 = arith.constant 0 : index
    %c0_49 = arith.constant 0 : index
    %86 = vector.load %arg10[%c0_48, %c0_49] : memref<40x1xbf16, #tpu.memory_space<vmem>>, vector<40x1xbf16>
    %cst_50 = arith.constant dense<0.000000e+00> : vector<1x1xf32>
    %87 = tpu.matmul %85, %86, %cst_50 {dimension_numbers = #tpu.dot_dimension_numbers<[1], [0], [0], [1], [0, 0, 1, 1], [], []>} : vector<1x40xbf16>, vector<40x1xbf16>, vector<1x1xf32> -> vector<1x1xf32>
    %c0_51 = arith.constant 0 : index
    %c0_52 = arith.constant 0 : index
    %88 = vector.load %arg11[%c0_51, %c0_52] : memref<1x1xf32, #tpu.memory_space<vmem>>, vector<1x1xf32>
    %89 = arith.addf %87, %88 : vector<1x1xf32>
    %cst_53 = arith.constant 0.000000e+00 : f32
    %90 = vector.broadcast %cst_53 : f32 to vector<1x1xf32>
    %91 = arith.maximumf %89, %90 : vector<1x1xf32>
    %c0_54 = arith.constant 0 : index
    %c0_55 = arith.constant 0 : index
    %c0_56 = arith.constant 0 : index
    %92 = vector.load %arg12[%c0_54, %c0_55, %c0_56] : memref<1x1x1xf32, #tpu.memory_space<vmem>>, vector<1x1x1xf32>
    %93 = vector.shape_cast %92 : vector<1x1x1xf32> to vector<1x1xf32>
    %94 = vector.shape_cast %91 : vector<1x1xf32> to vector<1x1x1xf32>
    tpu.vector_store %arg12[%c0_54, %c0_55, %c0_56], %94 {strides = array<i32>} : memref<1x1x1xf32, #tpu.memory_space<vmem>>, vector<1x1x1xf32>,
    return
  }
  func.func @transform_0(%arg0: i32) -> (i32, i32, i32) {
    %c0_i32 = arith.constant 0 : i32
    %c0_i32_0 = arith.constant 0 : i32
    %c0_i32_1 = arith.constant 0 : i32
    return %arg0, %c0_i32, %c0_i32_0 : i32, i32, i32
  }
  func.func @transform_1(%arg0: i32) -> (i32, i32) {
    %c0_i32 = arith.constant 0 : i32
    %c0_i32_0 = arith.constant 0 : i32
    %c0_i32_1 = arith.constant 0 : i32
    return %c0_i32, %c0_i32_0 : i32, i32
  }
  func.func @transform_2(%arg0: i32) -> (i32, i32) {
    %c0_i32 = arith.constant 0 : i32
    %c0_i32_0 = arith.constant 0 : i32
    %c0_i32_1 = arith.constant 0 : i32
    return %c0_i32, %c0_i32_0 : i32, i32
  }
  func.func @transform_3(%arg0: i32) -> (i32, i32) {
    %c0_i32 = arith.constant 0 : i32
    %c0_i32_0 = arith.constant 0 : i32
    %c0_i32_1 = arith.constant 0 : i32
    return %c0_i32, %c0_i32_0 : i32, i32
  }
  func.func @transform_4(%arg0: i32) -> (i32, i32) {
    %c0_i32 = arith.constant 0 : i32
    %c0_i32_0 = arith.constant 0 : i32
    %c0_i32_1 = arith.constant 0 : i32
    return %c0_i32, %c0_i32_0 : i32, i32
  }
  func.func @transform_5(%arg0: i32) -> (i32, i32) {
    %c0_i32 = arith.constant 0 : i32
    %c0_i32_0 = arith.constant 0 : i32
    %c0_i32_1 = arith.constant 0 : i32
    return %c0_i32, %c0_i32_0 : i32, i32
  }
  func.func @transform_6(%arg0: i32) -> (i32, i32) {
    %c0_i32 = arith.constant 0 : i32
    %c0_i32_0 = arith.constant 0 : i32
    %c0_i32_1 = arith.constant 0 : i32
    return %c0_i32, %c0_i32_0 : i32, i32
  }
  func.func @transform_7(%arg0: i32) -> (i32, i32) {
    %c0_i32 = arith.constant 0 : i32
    %c0_i32_0 = arith.constant 0 : i32
    %c0_i32_1 = arith.constant 0 : i32
    return %c0_i32, %c0_i32_0 : i32, i32
  }
  func.func @transform_8(%arg0: i32) -> (i32, i32) {
    %c0_i32 = arith.constant 0 : i32
    %c0_i32_0 = arith.constant 0 : i32
    %c0_i32_1 = arith.constant 0 : i32
    return %c0_i32, %c0_i32_0 : i32, i32
  }
  func.func @transform_9(%arg0: i32) -> (i32, i32) {
    %c0_i32 = arith.constant 0 : i32
    %c0_i32_0 = arith.constant 0 : i32
    %c0_i32_1 = arith.constant 0 : i32
    return %c0_i32, %c0_i32_0 : i32, i32
  }
  func.func @transform_10(%arg0: i32) -> (i32, i32) {
    %c0_i32 = arith.constant 0 : i32
    %c0_i32_0 = arith.constant 0 : i32
    %c0_i32_1 = arith.constant 0 : i32
    return %c0_i32, %c0_i32_0 : i32, i32
  }
  func.func @transform_11(%arg0: i32) -> (i32, i32, i32) {
    %c0_i32 = arith.constant 0 : i32
    %c0_i32_0 = arith.constant 0 : i32
    %c0_i32_1 = arith.constant 0 : i32
    return %arg0, %c0_i32, %c0_i32_0 : i32, i32, i32
  }
}

</mosaic_0001>

<llo_original>
// kernel: tpu_custom_call.1
$region0: #{tpu_custom_call.1}
  #allocation0 [shape = 'u32[]', space=smem, size = 0x4, offset = 0x4, fixed_abs, tag = 'smem constant byte address 0x4 - core index']
  #allocation1 [shape = 'u32[72,128]{1,0:T(1,128)}', space=vmem, size = 0x9000, scoped, tag = 'internal scratch']
  #allocation2 [shape = 'f32[128,8]{1,0:T(8,128)}', space=vmem, size = 0x10000, scoped, tag = 'scratch operand']
  #allocation3 [shape = 'f32[64,16]{1,0:T(8,128)}', space=vmem, size = 0x8000, scoped, tag = 'scratch operand']
  #allocation4 [shape = 'f32[16,32]{1,0:T(8,128)}', space=vmem, size = 0x2000, scoped, tag = 'scratch operand']
  #allocation5 [shape = 'f32[1,1]{1,0:T(1,128)S(1)}', space=vmem, size = 0x200, scoped, tag = 'scoped memory for tpu_custom_call.1']
  %s0 = inlined_call_operand.vmem [shape: f32[2,128,1], index: 0, kind: input, shape index: {}]
  %s1 = inlined_call_operand.vmem [shape: bf16[5,8], index: 1, kind: input, shape index: {}]
  %s2 = inlined_call_operand.vmem [shape: f32[1,8], index: 2, kind: input, shape index: {}]
  %s3 = inlined_call_operand.vmem [shape: bf16[40,16], index: 3, kind: input, shape index: {}]
  %s4 = inlined_call_operand.vmem [shape: f32[1,16], index: 4, kind: input, shape index: {}]
  %s5 = inlined_call_operand.vmem [shape: bf16[80,32], index: 5, kind: input, shape index: {}]
  %s6 = inlined_call_operand.vmem [shape: f32[1,32], index: 6, kind: input, shape index: {}]
  %s7 = inlined_call_operand.vmem [shape: bf16[128,40], index: 7, kind: input, shape index: {}]
  %s8 = inlined_call_operand.vmem [shape: f32[1,40], index: 8, kind: input, shape index: {}]
  %s9 = inlined_call_operand.vmem [shape: bf16[40,1], index: 9, kind: input, shape index: {}]
  %s10 = inlined_call_operand.<no memory space> [shape: f32[1,1], index: 10, kind: input, shape index: {}]
  %s11 = inlined_call_operand.vmem [shape: f32[2,1,1], index: 11, kind: output, shape index: {}]
  %s12 = sld [smem:[#allocation0]]
  $region77: #{tpu_custom_call.1} parent=0
    _
  %s14 = ssub.s32 1, %s12
  %s15 = scalar_select 0, %s14, %s12
  %v16 = vstv %s10
  %17 = vst [vmem:[#allocation5] sm:$0x1] %v16
  loop: start=0, step=1, limit=4
  $region2: #{tpu_custom_call.1} parent=0 // loop_pre_header
    _
  $region3: #{tpu_custom_call.1} parent=0 // loop_header
    %s19 = sphi 0, %s23
    %p20 = scmp.ge.s32.totalorder %s19, 4
    %s29 = sphi 0, %s31
    %s32 = sphi 0, %s29
    %s33 = sphi 0, %s32
    %s49 = sphi 0, %s33
    %s53 = sphi 0, %s53
    %s55 = sphi 0, %s53
    %s56 = sphi 0, %s55
    %s70 = sphi 0, %s56
    %s74 = sphi 0, %s74
    %s76 = sphi 0, %s74
    %s77 = sphi 0, %s76
    %s91 = sphi 0, %s77
    %s95 = sphi 0, %s95
    %s97 = sphi 0, %s95
    %s98 = sphi 0, %s97
    %s112 = sphi 0, %s98
    %s116 = sphi 0, %s116
    %s118 = sphi 0, %s116
    %s119 = sphi 0, %s118
    %s133 = sphi 0, %s119
    %s137 = sphi 0, %s137
    %s139 = sphi 0, %s137
    %s140 = sphi 0, %s139
    %s154 = sphi 0, %s140
    %s158 = sphi 0, %s158
    %s160 = sphi 0, %s158
    %s161 = sphi 0, %s160
    %s175 = sphi 0, %s161
    %s179 = sphi 0, %s179
    %s181 = sphi 0, %s179
    %s182 = sphi 0, %s181
    %s196 = sphi 0, %s182
    %s200 = sphi 0, %s200
    %s202 = sphi 0, %s200
    %s203 = sphi 0, %s202
    %s217 = sphi 0, %s203
    %s221 = sphi 0, %s221
    %s223 = sphi 0, %s221
    %s224 = sphi 0, %s223
    %s238 = sphi 0, %s224
    %s242 = sphi 0, %s242
    %s244 = sphi 0, %s242
    %s245 = sphi 0, %s244
    %s259 = sphi 0, %s245
    %s265 = sphi 0, %s267
    %s268 = sphi 0, %s265
    %s269 = sphi 0, %s268
    %s285 = sphi 0, %s269
  $region4: #{tpu_custom_call.1} parent=0 // loop_header_branch
    %22 = sbr.rel (%p20) target = $region8
  $region5: #{tpu_custom_call.1} parent=0 // loop_body
    %s24 = ssub.s32 %s19, 1
    %s25 = ssub.s32 %s19, 2
    %s26 = sadd.s32 %s19, 1
    %s27 = ssub.s32 %s19, %s26
    %p28 = scmp.eq.s32.totalorder %s27, 0
    %s30 = sadd.s32 %s29, 1
    %s31 = scalar_select %p28, %s29, %s30
    %p34 = pneg %p28
    %p35 = scmp.eq.s32.totalorder %s19, 1
    %p36 = por %p34, %p35
    %p37 = scmp.ne.s32.totalorder %s29, %s32
    %p38 = scmp.eq.s32.totalorder %s19, 0
    %p39 = por %p37, %p38
    %p40 = scmp.ne.s32.totalorder %s29, %s32
    %p41 = scmp.eq.s32.totalorder %s24, 1
    %p42 = por %p40, %p41
    %p43 = scmp.ne.s32.totalorder %s32, %s33
    %p44 = scmp.eq.s32.totalorder %s24, 0
    %p45 = por %p43, %p44
    %p46 = scmp.ne.s32.totalorder %s32, %s33
    %p47 = scmp.eq.s32.totalorder %s25, 1
    %p48 = por %p46, %p47
    %p50 = scmp.ne.s32.totalorder %s33, %s49
    %p51 = scmp.eq.s32.totalorder %s25, 0
    %p52 = por %p50, %p51
    %s54 = sadd.s32 %s53, 1
    %p57 = scmp.eq.s32.totalorder %s19, 1
    %p58 = scmp.ne.s32.totalorder %s53, %s55
    %p59 = scmp.eq.s32.totalorder %s19, 0
    %p60 = por %p58, %p59
    %p61 = scmp.ne.s32.totalorder %s53, %s55
    %p62 = scmp.eq.s32.totalorder %s24, 1
    %p63 = por %p61, %p62
    %p64 = scmp.ne.s32.totalorder %s55, %s56
    %p65 = scmp.eq.s32.totalorder %s24, 0
    %p66 = por %p64, %p65
    %p67 = scmp.ne.s32.totalorder %s55, %s56
    %p68 = scmp.eq.s32.totalorder %s25, 1
    %p69 = por %p67, %p68
    %p71 = scmp.ne.s32.totalorder %s56, %s70
    %p72 = scmp.eq.s32.totalorder %s25, 0
    %p73 = por %p71, %p72
    %s75 = sadd.s32 %s74, 1
    %p78 = scmp.eq.s32.totalorder %s19, 1
    %p79 = scmp.ne.s32.totalorder %s74, %s76
    %p80 = scmp.eq.s32.totalorder %s19, 0
    %p81 = por %p79, %p80
    %p82 = scmp.ne.s32.totalorder %s74, %s76
    %p83 = scmp.eq.s32.totalorder %s24, 1
    %p84 = por %p82, %p83
    %p85 = scmp.ne.s32.totalorder %s76, %s77
    %p86 = scmp.eq.s32.totalorder %s24, 0
    %p87 = por %p85, %p86
    %p88 = scmp.ne.s32.totalorder %s76, %s77
    %p89 = scmp.eq.s32.totalorder %s25, 1
    %p90 = por %p88, %p89
    %p92 = scmp.ne.s32.totalorder %s77, %s91
    %p93 = scmp.eq.s32.totalorder %s25, 0
    %p94 = por %p92, %p93
    %s96 = sadd.s32 %s95, 1
    %p99 = scmp.eq.s32.totalorder %s19, 1
    %p100 = scmp.ne.s32.totalorder %s95, %s97
    %p101 = scmp.eq.s32.totalorder %s19, 0
    %p102 = por %p100, %p101
    %p103 = scmp.ne.s32.totalorder %s95, %s97
    %p104 = scmp.eq.s32.totalorder %s24, 1
    %p105 = por %p103, %p104
    %p106 = scmp.ne.s32.totalorder %s97, %s98
    %p107 = scmp.eq.s32.totalorder %s24, 0
    %p108 = por %p106, %p107
    %p109 = scmp.ne.s32.totalorder %s97, %s98
    %p110 = scmp.eq.s32.totalorder %s25, 1
    %p111 = por %p109, %p110
    %p113 = scmp.ne.s32.totalorder %s98, %s112
    %p114 = scmp.eq.s32.totalorder %s25, 0
    %p115 = por %p113, %p114
    %s117 = sadd.s32 %s116, 1
    %p120 = scmp.eq.s32.totalorder %s19, 1
    %p121 = scmp.ne.s32.totalorder %s116, %s118
    %p122 = scmp.eq.s32.totalorder %s19, 0
    %p123 = por %p121, %p122
    %p124 = scmp.ne.s32.totalorder %s116, %s118
    %p125 = scmp.eq.s32.totalorder %s24, 1
    %p126 = por %p124, %p125
    %p127 = scmp.ne.s32.totalorder %s118, %s119
    %p128 = scmp.eq.s32.totalorder %s24, 0
    %p129 = por %p127, %p128
    %p130 = scmp.ne.s32.totalorder %s118, %s119
    %p131 = scmp.eq.s32.totalorder %s25, 1
    %p132 = por %p130, %p131
    %p134 = scmp.ne.s32.totalorder %s119, %s133
    %p135 = scmp.eq.s32.totalorder %s25, 0
    %p136 = por %p134, %p135
    %s138 = sadd.s32 %s137, 1
    %p141 = scmp.eq.s32.totalorder %s19, 1
    %p142 = scmp.ne.s32.totalorder %s137, %s139
    %p143 = scmp.eq.s32.totalorder %s19, 0
    %p144 = por %p142, %p143
    %p145 = scmp.ne.s32.totalorder %s137, %s139
    %p146 = scmp.eq.s32.totalorder %s24, 1
    %p147 = por %p145, %p146
    %p148 = scmp.ne.s32.totalorder %s139, %s140
    %p149 = scmp.eq.s32.totalorder %s24, 0
    %p150 = por %p148, %p149
    %p151 = scmp.ne.s32.totalorder %s139, %s140
    %p152 = scmp.eq.s32.totalorder %s25, 1
    %p153 = por %p151, %p152
    %p155 = scmp.ne.s32.totalorder %s140, %s154
    %p156 = scmp.eq.s32.totalorder %s25, 0
    %p157 = por %p155, %p156
    %s159 = sadd.s32 %s158, 1
    %p162 = scmp.eq.s32.totalorder %s19, 1
    %p163 = scmp.ne.s32.totalorder %s158, %s160
    %p164 = scmp.eq.s32.totalorder %s19, 0
    %p165 = por %p163, %p164
    %p166 = scmp.ne.s32.totalorder %s158, %s160
    %p167 = scmp.eq.s32.totalorder %s24, 1
    %p168 = por %p166, %p167
    %p169 = scmp.ne.s32.totalorder %s160, %s161
    %p170 = scmp.eq.s32.totalorder %s24, 0
    %p171 = por %p169, %p170
    %p172 = scmp.ne.s32.totalorder %s160, %s161
    %p173 = scmp.eq.s32.totalorder %s25, 1
    %p174 = por %p172, %p173
    %p176 = scmp.ne.s32.totalorder %s161, %s175
    %p177 = scmp.eq.s32.totalorder %s25, 0
    %p178 = por %p176, %p177
    %s180 = sadd.s32 %s179, 1
    %p183 = scmp.eq.s32.totalorder %s19, 1
    %p184 = scmp.ne.s32.totalorder %s179, %s181
    %p185 = scmp.eq.s32.totalorder %s19, 0
    %p186 = por %p184, %p185
    %p187 = scmp.ne.s32.totalorder %s179, %s181
    %p188 = scmp.eq.s32.totalorder %s24, 1
    %p189 = por %p187, %p188
    %p190 = scmp.ne.s32.totalorder %s181, %s182
    %p191 = scmp.eq.s32.totalorder %s24, 0
    %p192 = por %p190, %p191
    %p193 = scmp.ne.s32.totalorder %s181, %s182
    %p194 = scmp.eq.s32.totalorder %s25, 1
    %p195 = por %p193, %p194
    %p197 = scmp.ne.s32.totalorder %s182, %s196
    %p198 = scmp.eq.s32.totalorder %s25, 0
    %p199 = por %p197, %p198
    %s201 = sadd.s32 %s200, 1
    %p204 = scmp.eq.s32.totalorder %s19, 1
    %p205 = scmp.ne.s32.totalorder %s200, %s202
    %p206 = scmp.eq.s32.totalorder %s19, 0
    %p207 = por %p205, %p206
    %p208 = scmp.ne.s32.totalorder %s200, %s202
    %p209 = scmp.eq.s32.totalorder %s24, 1
    %p210 = por %p208, %p209
    %p211 = scmp.ne.s32.totalorder %s202, %s203
    %p212 = scmp.eq.s32.totalorder %s24, 0
    %p213 = por %p211, %p212
    %p214 = scmp.ne.s32.totalorder %s202, %s203
    %p215 = scmp.eq.s32.totalorder %s25, 1
    %p216 = por %p214, %p215
    %p218 = scmp.ne.s32.totalorder %s203, %s217
    %p219 = scmp.eq.s32.totalorder %s25, 0
    %p220 = por %p218, %p219
    %s222 = sadd.s32 %s221, 1
    %p225 = scmp.eq.s32.totalorder %s19, 1
    %p226 = scmp.ne.s32.totalorder %s221, %s223
    %p227 = scmp.eq.s32.totalorder %s19, 0
    %p228 = por %p226, %p227
    %p229 = scmp.ne.s32.totalorder %s221, %s223
    %p230 = scmp.eq.s32.totalorder %s24, 1
    %p231 = por %p229, %p230
    %p232 = scmp.ne.s32.totalorder %s223, %s224
    %p233 = scmp.eq.s32.totalorder %s24, 0
    %p234 = por %p232, %p233
    %p235 = scmp.ne.s32.totalorder %s223, %s224
    %p236 = scmp.eq.s32.totalorder %s25, 1
    %p237 = por %p235, %p236
    %p239 = scmp.ne.s32.totalorder %s224, %s238
    %p240 = scmp.eq.s32.totalorder %s25, 0
    %p241 = por %p239, %p240
    %s243 = sadd.s32 %s242, 1
    %p246 = scmp.eq.s32.totalorder %s19, 1
    %p247 = scmp.ne.s32.totalorder %s242, %s244
    %p248 = scmp.eq.s32.totalorder %s19, 0
    %p249 = por %p247, %p248
    %p250 = scmp.ne.s32.totalorder %s242, %s244
    %p251 = scmp.eq.s32.totalorder %s24, 1
    %p252 = por %p250, %p251
    %p253 = scmp.ne.s32.totalorder %s244, %s245
    %p254 = scmp.eq.s32.totalorder %s24, 0
    %p255 = por %p253, %p254
    %p256 = scmp.ne.s32.totalorder %s244, %s245
    %p257 = scmp.eq.s32.totalorder %s25, 1
    %p258 = por %p256, %p257
    %p260 = scmp.ne.s32.totalorder %s245, %s259
    %p261 = scmp.eq.s32.totalorder %s25, 0
    %p262 = por %p260, %p261
    %s263 = ssub.s32 %s19, %s26
    %p264 = scmp.eq.s32.totalorder %s263, 0
    %s266 = sadd.s32 %s265, 1
    %s267 = scalar_select %p264, %s265, %s266
    %p270 = pneg %p264
    %p271 = scmp.eq.s32.totalorder %s19, 1
    %p272 = por %p270, %p271
    %p273 = scmp.ne.s32.totalorder %s265, %s268
    %p274 = scmp.eq.s32.totalorder %s19, 0
    %p275 = por %p273, %p274
    %p276 = scmp.ne.s32.totalorder %s265, %s268
    %p277 = scmp.eq.s32.totalorder %s24, 1
    %p278 = por %p276, %p277
    %p279 = scmp.ne.s32.totalorder %s268, %s269
    %p280 = scmp.eq.s32.totalorder %s24, 0
    %p281 = por %p279, %p280
    %p282 = scmp.ne.s32.totalorder %s268, %s269
    %p283 = scmp.eq.s32.totalorder %s25, 1
    %p284 = por %p282, %p283
    %p286 = scmp.ne.s32.totalorder %s269, %s285
    %p287 = scmp.eq.s32.totalorder %s25, 0
    %p288 = por %p286, %p287
    %p289 = scmp.le.s32.totalorder 1, %s19
    %p290 = scmp.lt.s32.totalorder %s19, 3
    %p291 = pnand %p289, %p290
    %p292 = pneg %p291
    // Predicated region
    $region9: #{tpu_custom_call.1} parent=5 // pred_check
      _
    $region10: #{tpu_custom_call.1} parent=5 // pred_check_branch
      %294 = sbr.rel (%p291) target = $region12
    $region11: #{tpu_custom_call.1} parent=5 // pred_region
      %s295 = ssub.s32 %s19, 1
      // Predicated region
      $region13: #{tpu_custom_call.1} parent=11 // pred_check
        %p296 = pneg %p66
      $region14: #{tpu_custom_call.1} parent=11 // pred_check_branch
        %298 = sbr.rel (%p296) target = $region16
      $region15: #{tpu_custom_call.1} parent=11 // pred_region
        _
      $region16: #{tpu_custom_call.1} parent=11 // pred_fallthru
        _
      // Predicated region
      $region17: #{tpu_custom_call.1} parent=11 // pred_check
        %p299 = pneg %p87
      $region18: #{tpu_custom_call.1} parent=11 // pred_check_branch
        %301 = sbr.rel (%p299) target = $region20
      $region19: #{tpu_custom_call.1} parent=11 // pred_region
        _
      $region20: #{tpu_custom_call.1} parent=11 // pred_fallthru
        _
      // Predicated region
      $region21: #{tpu_custom_call.1} parent=11 // pred_check
        %p302 = pneg %p108
      $region22: #{tpu_custom_call.1} parent=11 // pred_check_branch
        %304 = sbr.rel (%p302) target = $region24
      $region23: #{tpu_custom_call.1} parent=11 // pred_region
        _
      $region24: #{tpu_custom_call.1} parent=11 // pred_fallthru
        _
      // Predicated region
      $region25: #{tpu_custom_call.1} parent=11 // pred_check
        %p305 = pneg %p129
      $region26: #{tpu_custom_call.1} parent=11 // pred_check_branch
        %307 = sbr.rel (%p305) target = $region28
      $region27: #{tpu_custom_call.1} parent=11 // pred_region
        _
      $region28: #{tpu_custom_call.1} parent=11 // pred_fallthru
        _
      // Predicated region
      $region29: #{tpu_custom_call.1} parent=11 // pred_check
        %p308 = pneg %p150
      $region30: #{tpu_custom_call.1} parent=11 // pred_check_branch
        %310 = sbr.rel (%p308) target = $region32
      $region31: #{tpu_custom_call.1} parent=11 // pred_region
        _
      $region32: #{tpu_custom_call.1} parent=11 // pred_fallthru
        _
      // Predicated region
      $region33: #{tpu_custom_call.1} parent=11 // pred_check
        %p311 = pneg %p171
      $region34: #{tpu_custom_call.1} parent=11 // pred_check_branch
        %313 = sbr.rel (%p311) target = $region36
      $region35: #{tpu_custom_call.1} parent=11 // pred_region
        _
      $region36: #{tpu_custom_call.1} parent=11 // pred_fallthru
        _
      // Predicated region
      $region37: #{tpu_custom_call.1} parent=11 // pred_check
        %p314 = pneg %p192
      $region38: #{tpu_custom_call.1} parent=11 // pred_check_branch
        %316 = sbr.rel (%p314) target = $region40
      $region39: #{tpu_custom_call.1} parent=11 // pred_region
        _
      $region40: #{tpu_custom_call.1} parent=11 // pred_fallthru
        _
      // Predicated region
      $region41: #{tpu_custom_call.1} parent=11 // pred_check
        %p317 = pneg %p213
      $region42: #{tpu_custom_call.1} parent=11 // pred_check_branch
        %319 = sbr.rel (%p317) target = $region44
      $region43: #{tpu_custom_call.1} parent=11 // pred_region
        _
      $region44: #{tpu_custom_call.1} parent=11 // pred_fallthru
        _
      // Predicated region
      $region45: #{tpu_custom_call.1} parent=11 // pred_check
        %p320 = pneg %p234
      $region46: #{tpu_custom_call.1} parent=11 // pred_check_branch
        %322 = sbr.rel (%p320) target = $region48
      $region47: #{tpu_custom_call.1} parent=11 // pred_region
        _
      $region48: #{tpu_custom_call.1} parent=11 // pred_fallthru
        _
      // Predicated region
      $region49: #{tpu_custom_call.1} parent=11 // pred_check
        %p323 = pneg %p255
      $region50: #{tpu_custom_call.1} parent=11 // pred_check_branch
        %325 = sbr.rel (%p323) target = $region52
      $region51: #{tpu_custom_call.1} parent=11 // pred_region
        _
      $region52: #{tpu_custom_call.1} parent=11 // pred_fallthru
        _
    $region12: #{tpu_custom_call.1} parent=5 // pred_fallthru
      _
    %p326 = scmp.lt.s32.totalorder %s19, 2
    // Predicated region
    $region53: #{tpu_custom_call.1} parent=5 // pred_check
      %p327 = pneg %p326
    $region54: #{tpu_custom_call.1} parent=5 // pred_check_branch
      %329 = sbr.rel (%p327) target = $region56
    $region55: #{tpu_custom_call.1} parent=5 // pred_region
      // Predicated region
      $region57: #{tpu_custom_call.1} parent=55 // pred_check
        %p330 = pneg %p39
      $region58: #{tpu_custom_call.1} parent=55 // pred_check_branch
        %332 = sbr.rel (%p330) target = $region60
      $region59: #{tpu_custom_call.1} parent=55 // pred_region
        %p333 = scmp.lt.s32.totalorder %s19, 1
        %s334 = scalar_select %p333, %s19, 1
        %s335 = smul.addr %s334, 16
        %s336 = smul.addr %s335, 8
        %s337 = scalar_lea.vmem %s0, %s336
      $region60: #{tpu_custom_call.1} parent=55 // pred_fallthru
        _
    $region56: #{tpu_custom_call.1} parent=5 // pred_fallthru
      _
    %p338 = scmp.le.s32.totalorder 1, %s19
    %p339 = scmp.lt.s32.totalorder %s19, 3
    %p340 = pnand %p338, %p339
    %p341 = pneg %p340
    // Predicated region
    $region61: #{tpu_custom_call.1} parent=5 // pred_check
      _
    $region62: #{tpu_custom_call.1} parent=5 // pred_check_branch
      %343 = sbr.rel (%p340) target = $region64
    $region63: #{tpu_custom_call.1} parent=5 // pred_region
      %s344 = ssub.s32 %s19, 1
      %p345 = scmp.lt.s32.totalorder %s24, 1
      %s346 = scalar_select %p345, %s24, 1
      %s347 = smul.addr %s346, 16
      %s348 = smul.addr %s347, 8
      %s349 = scalar_lea.vmem %s0, %s348
      %p350 = pneg %p45
      %p351 = pneg %p42
      %p352 = pneg %p66
      %p353 = pneg %p63
      %p354 = pneg %p87
      %p355 = pneg %p84
      %p356 = pneg %p108
      %p357 = pneg %p105
      %p358 = pneg %p129
      %p359 = pneg %p126
      %p360 = pneg %p150
      %p361 = pneg %p147
      %p362 = pneg %p171
      %p363 = pneg %p168
      %p364 = pneg %p192
      %p365 = pneg %p189
      %p366 = pneg %p213
      %p367 = pneg %p210
      %p368 = pneg %p234
      %p369 = pneg %p231
      %p370 = pneg %p255
      %p371 = pneg %p252
      %p372 = pneg %p281
      %p373 = pneg %p278
      %p374 = scmp.lt.s32.totalorder %s24, 1
      %s375 = scalar_select %p374, %s24, 1
      %s376 = scalar_lea.vmem %s11, %s375
      %p377 = scmp.lt.s32.totalorder %s24, 1
      %s378 = scalar_select %p377, %s24, 1
      %s379 = smul.addr %s378, 16
      %s380 = smul.addr %s379, 8
      %s381 = scalar_lea.vmem %s0, %s380
      %p382 = scmp.lt.s32.totalorder %s24, 1
      %s383 = scalar_select %p382, %s24, 1
      %s384 = scalar_lea.vmem %s11, %s383
      %v386 = vld [vmem:[%s381] sm:$0xff]
      %v387 = vld [vmem:[%s381 + $0x8] sm:$0xff]
      %v388 = vld [vmem:[%s381 + $0x10] sm:$0xff]
      %v389 = vld [vmem:[%s381 + $0x18] sm:$0xff]
      %v390 = vld [vmem:[%s381 + $0x20] sm:$0xff]
      %v391 = vld [vmem:[%s381 + $0x28] sm:$0xff]
      %v392 = vld [vmem:[%s381 + $0x30] sm:$0xff]
      %v393 = vld [vmem:[%s381 + $0x38] sm:$0xff]
      %v394 = vld [vmem:[%s381 + $0x40] sm:$0xff]
      %v395 = vld [vmem:[%s381 + $0x48] sm:$0xff]
      %v396 = vld [vmem:[%s381 + $0x50] sm:$0xff]
      %v397 = vld [vmem:[%s381 + $0x58] sm:$0xff]
      %v398 = vld [vmem:[%s381 + $0x60] sm:$0xff]
      %v399 = vld [vmem:[%s381 + $0x68] sm:$0xff]
      %v400 = vld [vmem:[%s381 + $0x70] sm:$0xff]
      %v401 = vld [vmem:[%s381 + $0x78] sm:$0xff]
      %v403 = vrot.slane %v401, 6
      %vm420 = vcmask 1041408
      %v421 = vrot.slane %v386, 6
      %v422 = vrot.slane %v387, 6
      %v423 = vsel %vm420, %v421, %v422
      %v424 = vrot.slane %v388, 6
      %v425 = vsel %vm420, %v422, %v424
      %v426 = vrot.slane %v389, 6
      %v427 = vsel %vm420, %v424, %v426
      %v428 = vrot.slane %v390, 6
      %v429 = vsel %vm420, %v426, %v428
      %v430 = vrot.slane %v391, 6
      %v431 = vsel %vm420, %v428, %v430
      %v432 = vrot.slane %v392, 6
      %v433 = vsel %vm420, %v430, %v432
      %v434 = vrot.slane %v393, 6
      %v435 = vsel %vm420, %v432, %v434
      %v436 = vrot.slane %v394, 6
      %v437 = vsel %vm420, %v434, %v436
      %v438 = vrot.slane %v395, 6
      %v439 = vsel %vm420, %v436, %v438
      %v440 = vrot.slane %v396, 6
      %v441 = vsel %vm420, %v438, %v440
      %v442 = vrot.slane %v397, 6
      %v443 = vsel %vm420, %v440, %v442
      %v444 = vrot.slane %v398, 6
      %v445 = vsel %vm420, %v442, %v444
      %v446 = vrot.slane %v399, 6
      %v447 = vsel %vm420, %v444, %v446
      %v448 = vrot.slane %v400, 6
      %v449 = vsel %vm420, %v446, %v448
      %v450 = vsel %vm420, %v448, %v403
      %v467 = vsel %vm420, %v403, %v421
      %vm469 = vcmask 1046528
      %v470 = vrot.slane %v467, 1
      %v471 = vrot.slane %v423, 1
      %v472 = vsel %vm469, %v470, %v471
      %v473 = vrot.slane %v425, 1
      %v474 = vsel %vm469, %v471, %v473
      %v475 = vrot.slane %v427, 1
      %v476 = vsel %vm469, %v473, %v475
      %v477 = vrot.slane %v429, 1
      %v478 = vsel %vm469, %v475, %v477
      %v479 = vrot.slane %v431, 1
      %v480 = vsel %vm469, %v477, %v479
      %v481 = vrot.slane %v433, 1
      %v482 = vsel %vm469, %v479, %v481
      %v483 = vrot.slane %v435, 1
      %v484 = vsel %vm469, %v481, %v483
      %v485 = vrot.slane %v437, 1
      %v486 = vsel %vm469, %v483, %v485
      %v487 = vrot.slane %v439, 1
      %v488 = vsel %vm469, %v485, %v487
      %v489 = vrot.slane %v441, 1
      %v490 = vsel %vm469, %v487, %v489
      %v491 = vrot.slane %v443, 1
      %v492 = vsel %vm469, %v489, %v491
      %v493 = vrot.slane %v445, 1
      %v494 = vsel %vm469, %v491, %v493
      %v495 = vrot.slane %v447, 1
      %v496 = vsel %vm469, %v493, %v495
      %v497 = vrot.slane %v449, 1
      %v498 = vsel %vm469, %v495, %v497
      %v499 = vrot.slane %v450, 1
      %v500 = vsel %vm469, %v497, %v499
      %v501 = vsel %vm469, %v499, %v470
      %502 = vrot.lane.b32.xlu0 %v472, 1
      %v503 = vpop.permute.xlu0 %502
      %504 = vrot.lane.b32.xlu0 %v474, 1
      %v505 = vpop.permute.xlu0 %504
      %506 = vrot.lane.b32.xlu0 %v476, 1
      %v507 = vpop.permute.xlu0 %506
      %508 = vrot.lane.b32.xlu0 %v478, 1
      %v509 = vpop.permute.xlu0 %508
      %510 = vrot.lane.b32.xlu0 %v480, 1
      %v511 = vpop.permute.xlu0 %510
      %512 = vrot.lane.b32.xlu0 %v482, 1
      %v513 = vpop.permute.xlu0 %512
      %514 = vrot.lane.b32.xlu0 %v484, 1
      %v515 = vpop.permute.xlu0 %514
      %516 = vrot.lane.b32.xlu0 %v486, 1
      %v517 = vpop.permute.xlu0 %516
      %518 = vrot.lane.b32.xlu0 %v488, 1
      %v519 = vpop.permute.xlu0 %518
      %520 = vrot.lane.b32.xlu0 %v490, 1
      %v521 = vpop.permute.xlu0 %520
      %522 = vrot.lane.b32.xlu0 %v492, 1
      %v523 = vpop.permute.xlu0 %522
      %524 = vrot.lane.b32.xlu0 %v494, 1
      %v525 = vpop.permute.xlu0 %524
      %526 = vrot.lane.b32.xlu0 %v496, 1
      %v527 = vpop.permute.xlu0 %526
      %528 = vrot.lane.b32.xlu0 %v498, 1
      %v529 = vpop.permute.xlu0 %528
      %530 = vrot.lane.b32.xlu0 %v500, 1
      %v531 = vpop.permute.xlu0 %530
      %532 = vrot.lane.b32.xlu0 %v501, 1
      %v533 = vpop.permute.xlu0 %532
      %vm550 = vcmask 1045504
      %v551 = vrot.slane %v467, 2
      %v552 = vrot.slane %v423, 2
      %v553 = vsel %vm550, %v551, %v552
      %v554 = vrot.slane %v425, 2
      %v555 = vsel %vm550, %v552, %v554
      %v556 = vrot.slane %v427, 2
      %v557 = vsel %vm550, %v554, %v556
      %v558 = vrot.slane %v429, 2
      %v559 = vsel %vm550, %v556, %v558
      %v560 = vrot.slane %v431, 2
      %v561 = vsel %vm550, %v558, %v560
      %v562 = vrot.slane %v433, 2
      %v563 = vsel %vm550, %v560, %v562
      %v564 = vrot.slane %v435, 2
      %v565 = vsel %vm550, %v562, %v564
      %v566 = vrot.slane %v437, 2
      %v567 = vsel %vm550, %v564, %v566
      %v568 = vrot.slane %v439, 2
      %v569 = vsel %vm550, %v566, %v568
      %v570 = vrot.slane %v441, 2
      %v571 = vsel %vm550, %v568, %v570
      %v572 = vrot.slane %v443, 2
      %v573 = vsel %vm550, %v570, %v572
      %v574 = vrot.slane %v445, 2
      %v575 = vsel %vm550, %v572, %v574
      %v576 = vrot.slane %v447, 2
      %v577 = vsel %vm550, %v574, %v576
      %v578 = vrot.slane %v449, 2
      %v579 = vsel %vm550, %v576, %v578
      %v580 = vrot.slane %v450, 2
      %v581 = vsel %vm550, %v578, %v580
      %v582 = vsel %vm550, %v580, %v551
      %583 = vrot.lane.b32.xlu0 %v553, 2
      %v584 = vpop.permute.xlu0 %583
      %585 = vrot.lane.b32.xlu0 %v555, 2
      %v586 = vpop.permute.xlu0 %585
      %587 = vrot.lane.b32.xlu0 %v557, 2
      %v588 = vpop.permute.xlu0 %587
      %589 = vrot.lane.b32.xlu0 %v559, 2
      %v590 = vpop.permute.xlu0 %589
      %591 = vrot.lane.b32.xlu0 %v561, 2
      %v592 = vpop.permute.xlu0 %591
      %593 = vrot.lane.b32.xlu0 %v563, 2
      %v594 = vpop.permute.xlu0 %593
      %595 = vrot.lane.b32.xlu0 %v565, 2
      %v596 = vpop.permute.xlu0 %595
      %597 = vrot.lane.b32.xlu0 %v567, 2
      %v598 = vpop.permute.xlu0 %597
      %599 = vrot.lane.b32.xlu0 %v569, 2
      %v600 = vpop.permute.xlu0 %599
      %601 = vrot.lane.b32.xlu0 %v571, 2
      %v602 = vpop.permute.xlu0 %601
      %603 = vrot.lane.b32.xlu0 %v573, 2
      %v604 = vpop.permute.xlu0 %603
      %605 = vrot.lane.b32.xlu0 %v575, 2
      %v606 = vpop.permute.xlu0 %605
      %607 = vrot.lane.b32.xlu0 %v577, 2
      %v608 = vpop.permute.xlu0 %607
      %609 = vrot.lane.b32.xlu0 %v579, 2
      %v610 = vpop.permute.xlu0 %609
      %611 = vrot.lane.b32.xlu0 %v581, 2
      %v612 = vpop.permute.xlu0 %611
      %613 = vrot.lane.b32.xlu0 %v582, 2
      %v614 = vpop.permute.xlu0 %613
      %vm631 = vcmask 1044480
      %v632 = vrot.slane %v467, 3
      %v633 = vrot.slane %v423, 3
      %v634 = vsel %vm631, %v632, %v633
      %v635 = vrot.slane %v425, 3
      %v636 = vsel %vm631, %v633, %v635
      %v637 = vrot.slane %v427, 3
      %v638 = vsel %vm631, %v635, %v637
      %v639 = vrot.slane %v429, 3
      %v640 = vsel %vm631, %v637, %v639
      %v641 = vrot.slane %v431, 3
      %v642 = vsel %vm631, %v639, %v641
      %v643 = vrot.slane %v433, 3
      %v644 = vsel %vm631, %v641, %v643
      %v645 = vrot.slane %v435, 3
      %v646 = vsel %vm631, %v643, %v645
      %v647 = vrot.slane %v437, 3
      %v648 = vsel %vm631, %v645, %v647
      %v649 = vrot.slane %v439, 3
      %v650 = vsel %vm631, %v647, %v649
      %v651 = vrot.slane %v441, 3
      %v652 = vsel %vm631, %v649, %v651
      %v653 = vrot.slane %v443, 3
      %v654 = vsel %vm631, %v651, %v653
      %v655 = vrot.slane %v445, 3
      %v656 = vsel %vm631, %v653, %v655
      %v657 = vrot.slane %v447, 3
      %v658 = vsel %vm631, %v655, %v657
      %v659 = vrot.slane %v449, 3
      %v660 = vsel %vm631, %v657, %v659
      %v661 = vrot.slane %v450, 3
      %v662 = vsel %vm631, %v659, %v661
      %v663 = vsel %vm631, %v661, %v632
      %664 = vrot.lane.b32.xlu0 %v634, 3
      %v665 = vpop.permute.xlu0 %664
      %666 = vrot.lane.b32.xlu0 %v636, 3
      %v667 = vpop.permute.xlu0 %666
      %668 = vrot.lane.b32.xlu0 %v638, 3
      %v669 = vpop.permute.xlu0 %668
      %670 = vrot.lane.b32.xlu0 %v640, 3
      %v671 = vpop.permute.xlu0 %670
      %672 = vrot.lane.b32.xlu0 %v642, 3
      %v673 = vpop.permute.xlu0 %672
      %674 = vrot.lane.b32.xlu0 %v644, 3
      %v675 = vpop.permute.xlu0 %674
      %676 = vrot.lane.b32.xlu0 %v646, 3
      %v677 = vpop.permute.xlu0 %676
      %678 = vrot.lane.b32.xlu0 %v648, 3
      %v679 = vpop.permute.xlu0 %678
      %680 = vrot.lane.b32.xlu0 %v650, 3
      %v681 = vpop.permute.xlu0 %680
      %682 = vrot.lane.b32.xlu0 %v652, 3
      %v683 = vpop.permute.xlu0 %682
      %684 = vrot.lane.b32.xlu0 %v654, 3
      %v685 = vpop.permute.xlu0 %684
      %686 = vrot.lane.b32.xlu0 %v656, 3
      %v687 = vpop.permute.xlu0 %686
      %688 = vrot.lane.b32.xlu0 %v658, 3
      %v689 = vpop.permute.xlu0 %688
      %690 = vrot.lane.b32.xlu0 %v660, 3
      %v691 = vpop.permute.xlu0 %690
      %692 = vrot.lane.b32.xlu0 %v662, 3
      %v693 = vpop.permute.xlu0 %692
      %694 = vrot.lane.b32.xlu0 %v663, 3
      %v695 = vpop.permute.xlu0 %694
      %vm712 = vcmask 1043456
      %v713 = vrot.slane %v467, 4
      %v714 = vrot.slane %v423, 4
      %v715 = vsel %vm712, %v713, %v714
      %v716 = vrot.slane %v425, 4
      %v717 = vsel %vm712, %v714, %v716
      %v718 = vrot.slane %v427, 4
      %v719 = vsel %vm712, %v716, %v718
      %v720 = vrot.slane %v429, 4
      %v721 = vsel %vm712, %v718, %v720
      %v722 = vrot.slane %v431, 4
      %v723 = vsel %vm712, %v720, %v722
      %v724 = vrot.slane %v433, 4
      %v725 = vsel %vm712, %v722, %v724
      %v726 = vrot.slane %v435, 4
      %v727 = vsel %vm712, %v724, %v726
      %v728 = vrot.slane %v437, 4
      %v729 = vsel %vm712, %v726, %v728
      %v730 = vrot.slane %v439, 4
      %v731 = vsel %vm712, %v728, %v730
      %v732 = vrot.slane %v441, 4
      %v733 = vsel %vm712, %v730, %v732
      %v734 = vrot.slane %v443, 4
      %v735 = vsel %vm712, %v732, %v734
      %v736 = vrot.slane %v445, 4
      %v737 = vsel %vm712, %v734, %v736
      %v738 = vrot.slane %v447, 4
      %v739 = vsel %vm712, %v736, %v738
      %v740 = vrot.slane %v449, 4
      %v741 = vsel %vm712, %v738, %v740
      %v742 = vrot.slane %v450, 4
      %v743 = vsel %vm712, %v740, %v742
      %v744 = vsel %vm712, %v742, %v713
      %745 = vrot.lane.b32.xlu0 %v715, 4
      %v746 = vpop.permute.xlu0 %745
      %747 = vrot.lane.b32.xlu0 %v717, 4
      %v748 = vpop.permute.xlu0 %747
      %749 = vrot.lane.b32.xlu0 %v719, 4
      %v750 = vpop.permute.xlu0 %749
      %751 = vrot.lane.b32.xlu0 %v721, 4
      %v752 = vpop.permute.xlu0 %751
      %753 = vrot.lane.b32.xlu0 %v723, 4
      %v754 = vpop.permute.xlu0 %753
      %755 = vrot.lane.b32.xlu0 %v725, 4
      %v756 = vpop.permute.xlu0 %755
      %757 = vrot.lane.b32.xlu0 %v727, 4
      %v758 = vpop.permute.xlu0 %757
      %759 = vrot.lane.b32.xlu0 %v729, 4
      %v760 = vpop.permute.xlu0 %759
      %761 = vrot.lane.b32.xlu0 %v731, 4
      %v762 = vpop.permute.xlu0 %761
      %763 = vrot.lane.b32.xlu0 %v733, 4
      %v764 = vpop.permute.xlu0 %763
      %765 = vrot.lane.b32.xlu0 %v735, 4
      %v766 = vpop.permute.xlu0 %765
      %767 = vrot.lane.b32.xlu0 %v737, 4
      %v768 = vpop.permute.xlu0 %767
      %769 = vrot.lane.b32.xlu0 %v739, 4
      %v770 = vpop.permute.xlu0 %769
      %771 = vrot.lane.b32.xlu0 %v741, 4
      %v772 = vpop.permute.xlu0 %771
      %773 = vrot.lane.b32.xlu0 %v743, 4
      %v774 = vpop.permute.xlu0 %773
      %775 = vrot.lane.b32.xlu0 %v744, 4
      %v776 = vpop.permute.xlu0 %775
      %vm793 = vcmask 7168
      %v794 = vsel %vm793, %v467, %v503
      %v795 = vsel %vm793, %v423, %v505
      %v796 = vsel %vm793, %v425, %v507
      %v797 = vsel %vm793, %v427, %v509
      %v798 = vsel %vm793, %v429, %v511
      %v799 = vsel %vm793, %v431, %v513
      %v800 = vsel %vm793, %v433, %v515
      %v801 = vsel %vm793, %v435, %v517
      %v802 = vsel %vm793, %v437, %v519
      %v803 = vsel %vm793, %v439, %v521
      %v804 = vsel %vm793, %v441, %v523
      %v805 = vsel %vm793, %v443, %v525
      %v806 = vsel %vm793, %v445, %v527
      %v807 = vsel %vm793, %v447, %v529
      %v808 = vsel %vm793, %v449, %v531
      %v809 = vsel %vm793, %v450, %v533
      %vm810 = vcmask 15360
      %v811 = vsel %vm810, %v794, %v584
      %v812 = vsel %vm810, %v795, %v586
      %v813 = vsel %vm810, %v796, %v588
      %v814 = vsel %vm810, %v797, %v590
      %v815 = vsel %vm810, %v798, %v592
      %v816 = vsel %vm810, %v799, %v594
      %v817 = vsel %vm810, %v800, %v596
      %v818 = vsel %vm810, %v801, %v598
      %v819 = vsel %vm810, %v802, %v600
      %v820 = vsel %vm810, %v803, %v602
      %v821 = vsel %vm810, %v804, %v604
      %v822 = vsel %vm810, %v805, %v606
      %v823 = vsel %vm810, %v806, %v608
      %v824 = vsel %vm810, %v807, %v610
      %v825 = vsel %vm810, %v808, %v612
      %v826 = vsel %vm810, %v809, %v614
      %vm827 = vcmask 23552
      %v828 = vsel %vm827, %v811, %v665
      %v829 = vsel %vm827, %v812, %v667
      %v830 = vsel %vm827, %v813, %v669
      %v831 = vsel %vm827, %v814, %v671
      %v832 = vsel %vm827, %v815, %v673
      %v833 = vsel %vm827, %v816, %v675
      %v834 = vsel %vm827, %v817, %v677
      %v835 = vsel %vm827, %v818, %v679
      %v836 = vsel %vm827, %v819, %v681
      %v837 = vsel %vm827, %v820, %v683
      %v838 = vsel %vm827, %v821, %v685
      %v839 = vsel %vm827, %v822, %v687
      %v840 = vsel %vm827, %v823, %v689
      %v841 = vsel %vm827, %v824, %v691
      %v842 = vsel %vm827, %v825, %v693
      %v843 = vsel %vm827, %v826, %v695
      %vm844 = vcmask 31744
      %v845 = vsel %vm844, %v828, %v746
      %v846 = vsel %vm844, %v829, %v748
      %v847 = vsel %vm844, %v830, %v750
      %v848 = vsel %vm844, %v831, %v752
      %v849 = vsel %vm844, %v832, %v754
      %v850 = vsel %vm844, %v833, %v756
      %v851 = vsel %vm844, %v834, %v758
      %v852 = vsel %vm844, %v835, %v760
      %v853 = vsel %vm844, %v836, %v762
      %v854 = vsel %vm844, %v837, %v764
      %v855 = vsel %vm844, %v838, %v766
      %v856 = vsel %vm844, %v839, %v768
      %v857 = vsel %vm844, %v840, %v770
      %v858 = vsel %vm844, %v841, %v772
      %v859 = vsel %vm844, %v842, %v774
      %v860 = vsel %vm844, %v843, %v776
      %v861 = vpack.c.bf16 %v846, %v845
      %v862 = vpack.c.bf16 %v848, %v847
      %v863 = vpack.c.bf16 %v850, %v849
      %v864 = vpack.c.bf16 %v852, %v851
      %v865 = vpack.c.bf16 %v854, %v853
      %v866 = vpack.c.bf16 %v856, %v855
      %v867 = vpack.c.bf16 %v858, %v857
      %v868 = vpack.c.bf16 %v860, %v859
      %v869 = vld [vmem:[%s1] sm:$0x7]
      %v870 = vld [vmem:[%s2] sm:$0x1]
      %v872 = vperm.slane %v870, 0
      %vm874 = vcmask 39936
      %v876 = vsel %vm874, %v861, 0
      %v879 = vsel %vm874, %v862, 0
      %v882 = vsel %vm874, %v863, 0
      %v885 = vsel %vm874, %v864, 0
      %v888 = vsel %vm874, %v865, 0
      %v891 = vsel %vm874, %v866, 0
      %v894 = vsel %vm874, %v867, 0
      %v897 = vsel %vm874, %v868, 0
      %vm899 = vcmask 1042432
      %v900 = vsel %vm420, 4294967295, 65535
      %v901 = vsel %vm899, %v900, 0
      %v903 = vand.u32 %v869, %v901
      %905 = vmatpush.bf16.msra.mxu0 0
      %906 = vmatpush.bf16.msra.mxu0 0
      %907 = vmatpush.bf16.msra.mxu0 0
      %908 = vmatpush.bf16.msra.mxu0 0
      %909 = vmatpush.bf16.msra.mxu0 0
      %910 = vmatpush.bf16.msra.mxu0 0
      %911 = vmatpush.bf16.msra.mxu0 0
      %912 = vmatpush.bf16.msra.mxu0 %v903
      %913 = vmatmul.bf16.gmra.mxu0 %v876
      %v914 = vpop.f32.mrf.mxu0
      %v915 = vadd.f32 %v872, %v914
      %v916 = vpop.f32.mrf.mxu0
      %v917 = vadd.f32 %v872, %v916
      %918 = vmatmul.bf16.gmra.mxu0 %v879
      %v919 = vpop.f32.mrf.mxu0
      %v920 = vadd.f32 %v872, %v919
      %v921 = vpop.f32.mrf.mxu0
      %v922 = vadd.f32 %v872, %v921
      %923 = vmatmul.bf16.gmra.mxu0 %v882
      %v924 = vpop.f32.mrf.mxu0
      %v925 = vadd.f32 %v872, %v924
      %v926 = vpop.f32.mrf.mxu0
      %v927 = vadd.f32 %v872, %v926
      %928 = vmatmul.bf16.gmra.mxu0 %v885
      %v929 = vpop.f32.mrf.mxu0
      %v930 = vadd.f32 %v872, %v929
      %v931 = vpop.f32.mrf.mxu0
      %v932 = vadd.f32 %v872, %v931
      %933 = vmatmul.bf16.gmra.mxu0 %v888
      %v934 = vpop.f32.mrf.mxu0
      %v935 = vadd.f32 %v872, %v934
      %v936 = vpop.f32.mrf.mxu0
      %v937 = vadd.f32 %v872, %v936
      %938 = vmatmul.bf16.gmra.mxu0 %v891
      %v939 = vpop.f32.mrf.mxu0
      %v940 = vadd.f32 %v872, %v939
      %v941 = vpop.f32.mrf.mxu0
      %v942 = vadd.f32 %v872, %v941
      %943 = vmatmul.bf16.gmra.mxu0 %v894
      %v944 = vpop.f32.mrf.mxu0
      %v945 = vadd.f32 %v872, %v944
      %v946 = vpop.f32.mrf.mxu0
      %v947 = vadd.f32 %v872, %v946
      %948 = vmatmul.bf16.gmra.mxu0 %v897
      %v949 = vpop.f32.mrf.mxu0
      %v950 = vadd.f32 %v872, %v949
      %v951 = vpop.f32.mrf.mxu0
      %v952 = vadd.f32 %v872, %v951
      %953 = vdwg.mxu0
      %v954 = vmax.f32 %v915, 0.0
      %v955 = vmax.f32 %v917, 0.0
      %v956 = vmax.f32 %v920, 0.0
      %v957 = vmax.f32 %v922, 0.0
      %v958 = vmax.f32 %v925, 0.0
      %v959 = vmax.f32 %v927, 0.0
      %v960 = vmax.f32 %v930, 0.0
      %v961 = vmax.f32 %v932, 0.0
      %v962 = vmax.f32 %v935, 0.0
      %v963 = vmax.f32 %v937, 0.0
      %v964 = vmax.f32 %v940, 0.0
      %v965 = vmax.f32 %v942, 0.0
      %v966 = vmax.f32 %v945, 0.0
      %v967 = vmax.f32 %v947, 0.0
      %v968 = vmax.f32 %v950, 0.0
      %v969 = vmax.f32 %v952, 0.0
      %vm970 = vcmask 64512
      %971 = vst.msk [vmem:[#allocation2] sm:$0xff] %vm970, %v954
      %972 = vst.msk [vmem:[#allocation2 + $0x8] sm:$0xff] %vm970, %v955
      %973 = vst.msk [vmem:[#allocation2 + $0x10] sm:$0xff] %vm970, %v956
      %974 = vst.msk [vmem:[#allocation2 + $0x18] sm:$0xff] %vm970, %v957
      %975 = vst.msk [vmem:[#allocation2 + $0x20] sm:$0xff] %vm970, %v958
      %976 = vst.msk [vmem:[#allocation2 + $0x28] sm:$0xff] %vm970, %v959
      %977 = vst.msk [vmem:[#allocation2 + $0x30] sm:$0xff] %vm970, %v960
      %978 = vst.msk [vmem:[#allocation2 + $0x38] sm:$0xff] %vm970, %v961
      %979 = vst.msk [vmem:[#allocation2 + $0x40] sm:$0xff] %vm970, %v962
      %980 = vst.msk [vmem:[#allocation2 + $0x48] sm:$0xff] %vm970, %v963
      %981 = vst.msk [vmem:[#allocation2 + $0x50] sm:$0xff] %vm970, %v964
      %982 = vst.msk [vmem:[#allocation2 + $0x58] sm:$0xff] %vm970, %v965
      %983 = vst.msk [vmem:[#allocation2 + $0x60] sm:$0xff] %vm970, %v966
      %984 = vst.msk [vmem:[#allocation2 + $0x68] sm:$0xff] %vm970, %v967
      %985 = vst.msk [vmem:[#allocation2 + $0x70] sm:$0xff] %vm970, %v968
      %986 = vst.msk [vmem:[#allocation2 + $0x78] sm:$0xff] %vm970, %v969
      %v987 = vld [vmem:[#allocation2] ss:$2 sm:$0xff]
      %s988 = scalar_lea.vmem [#allocation2], 16
      %v989 = vld [vmem:[%s988] ss:$2 sm:$0xff]
      %s990 = scalar_lea.vmem [#allocation2], 32
      %v991 = vld [vmem:[%s990] ss:$2 sm:$0xff]
      %s992 = scalar_lea.vmem [#allocation2], 48
      %v993 = vld [vmem:[%s992] ss:$2 sm:$0xff]
      %s994 = scalar_lea.vmem [#allocation2], 64
      %v995 = vld [vmem:[%s994] ss:$2 sm:$0xff]
      %s996 = scalar_lea.vmem [#allocation2], 80
      %v997 = vld [vmem:[%s996] ss:$2 sm:$0xff]
      %s998 = scalar_lea.vmem [#allocation2], 96
      %v999 = vld [vmem:[%s998] ss:$2 sm:$0xff]
      %s1000 = scalar_lea.vmem [#allocation2], 112
      %v1001 = vld [vmem:[%s1000] ss:$2 sm:$0xff]
      %s1002 = scalar_lea.vmem [#allocation2], 1
      %v1003 = vld [vmem:[%s1002] ss:$2 sm:$0xff]
      %s1004 = scalar_lea.vmem [#allocation2], 17
      %v1005 = vld [vmem:[%s1004] ss:$2 sm:$0xff]
      %s1006 = scalar_lea.vmem [#allocation2], 33
      %v1007 = vld [vmem:[%s1006] ss:$2 sm:$0xff]
      %s1008 = scalar_lea.vmem [#allocation2], 49
      %v1009 = vld [vmem:[%s1008] ss:$2 sm:$0xff]
      %s1010 = scalar_lea.vmem [#allocation2], 65
      %v1011 = vld [vmem:[%s1010] ss:$2 sm:$0xff]
      %s1012 = scalar_lea.vmem [#allocation2], 81
      %v1013 = vld [vmem:[%s1012] ss:$2 sm:$0xff]
      %s1014 = scalar_lea.vmem [#allocation2], 97
      %v1015 = vld [vmem:[%s1014] ss:$2 sm:$0xff]
      %s1016 = scalar_lea.vmem [#allocation2], 113
      %v1017 = vld [vmem:[%s1016] ss:$2 sm:$0xff]
      %v1018 = vmax.f32 %v987, %v1003
      %v1019 = vmax.f32 %v989, %v1005
      %v1020 = vmax.f32 %v991, %v1007
      %v1021 = vmax.f32 %v993, %v1009
      %v1022 = vmax.f32 %v995, %v1011
      %v1023 = vmax.f32 %v997, %v1013
      %v1024 = vmax.f32 %v999, %v1015
      %v1025 = vmax.f32 %v1001, %v1017
      %v1027 = vrot.slane %v1025, 6
      %v1036 = vrot.slane %v1018, 6
      %v1037 = vrot.slane %v1019, 6
      %v1038 = vsel %vm420, %v1036, %v1037
      %v1039 = vrot.slane %v1020, 6
      %v1040 = vsel %vm420, %v1037, %v1039
      %v1041 = vrot.slane %v1021, 6
      %v1042 = vsel %vm420, %v1039, %v1041
      %v1043 = vrot.slane %v1022, 6
      %v1044 = vsel %vm420, %v1041, %v1043
      %v1045 = vrot.slane %v1023, 6
      %v1046 = vsel %vm420, %v1043, %v1045
      %v1047 = vrot.slane %v1024, 6
      %v1048 = vsel %vm420, %v1045, %v1047
      %v1049 = vsel %vm420, %v1047, %v1027
      %v1058 = vsel %vm420, %v1027, %v1036
      %v1060 = vrot.slane %v1058, 1
      %v1061 = vrot.slane %v1038, 1
      %v1062 = vsel %vm469, %v1060, %v1061
      %v1063 = vrot.slane %v1040, 1
      %v1064 = vsel %vm469, %v1061, %v1063
      %v1065 = vrot.slane %v1042, 1
      %v1066 = vsel %vm469, %v1063, %v1065
      %v1067 = vrot.slane %v1044, 1
      %v1068 = vsel %vm469, %v1065, %v1067
      %v1069 = vrot.slane %v1046, 1
      %v1070 = vsel %vm469, %v1067, %v1069
      %v1071 = vrot.slane %v1048, 1
      %v1072 = vsel %vm469, %v1069, %v1071
      %v1073 = vrot.slane %v1049, 1
      %v1074 = vsel %vm469, %v1071, %v1073
      %v1075 = vsel %vm469, %v1073, %v1060
      %1076 = vrot.lane.b32.xlu0 %v1062, 8
      %v1077 = vpop.permute.xlu0 %1076
      %1078 = vrot.lane.b32.xlu0 %v1064, 8
      %v1079 = vpop.permute.xlu0 %1078
      %1080 = vrot.lane.b32.xlu0 %v1066, 8
      %v1081 = vpop.permute.xlu0 %1080
      %1082 = vrot.lane.b32.xlu0 %v1068, 8
      %v1083 = vpop.permute.xlu0 %1082
      %1084 = vrot.lane.b32.xlu0 %v1070, 8
      %v1085 = vpop.permute.xlu0 %1084
      %1086 = vrot.lane.b32.xlu0 %v1072, 8
      %v1087 = vpop.permute.xlu0 %1086
      %1088 = vrot.lane.b32.xlu0 %v1074, 8
      %v1089 = vpop.permute.xlu0 %1088
      %1090 = vrot.lane.b32.xlu0 %v1075, 8
      %v1091 = vpop.permute.xlu0 %1090
      %v1100 = vrot.slane %v1058, 2
      %v1101 = vrot.slane %v1038, 2
      %v1102 = vsel %vm550, %v1100, %v1101
      %v1103 = vrot.slane %v1040, 2
      %v1104 = vsel %vm550, %v1101, %v1103
      %v1105 = vrot.slane %v1042, 2
      %v1106 = vsel %vm550, %v1103, %v1105
      %v1107 = vrot.slane %v1044, 2
      %v1108 = vsel %vm550, %v1105, %v1107
      %v1109 = vrot.slane %v1046, 2
      %v1110 = vsel %vm550, %v1107, %v1109
      %v1111 = vrot.slane %v1048, 2
      %v1112 = vsel %vm550, %v1109, %v1111
      %v1113 = vrot.slane %v1049, 2
      %v1114 = vsel %vm550, %v1111, %v1113
      %v1115 = vsel %vm550, %v1113, %v1100
      %1116 = vrot.lane.b32.xlu0 %v1102, 16
      %v1117 = vpop.permute.xlu0 %1116
      %1118 = vrot.lane.b32.xlu0 %v1104, 16
      %v1119 = vpop.permute.xlu0 %1118
      %1120 = vrot.lane.b32.xlu0 %v1106, 16
      %v1121 = vpop.permute.xlu0 %1120
      %1122 = vrot.lane.b32.xlu0 %v1108, 16
      %v1123 = vpop.permute.xlu0 %1122
      %1124 = vrot.lane.b32.xlu0 %v1110, 16
      %v1125 = vpop.permute.xlu0 %1124
      %1126 = vrot.lane.b32.xlu0 %v1112, 16
      %v1127 = vpop.permute.xlu0 %1126
      %1128 = vrot.lane.b32.xlu0 %v1114, 16
      %v1129 = vpop.permute.xlu0 %1128
      %1130 = vrot.lane.b32.xlu0 %v1115, 16
      %v1131 = vpop.permute.xlu0 %1130
      %v1140 = vrot.slane %v1058, 3
      %v1141 = vrot.slane %v1038, 3
      %v1142 = vsel %vm631, %v1140, %v1141
      %v1143 = vrot.slane %v1040, 3
      %v1144 = vsel %vm631, %v1141, %v1143
      %v1145 = vrot.slane %v1042, 3
      %v1146 = vsel %vm631, %v1143, %v1145
      %v1147 = vrot.slane %v1044, 3
      %v1148 = vsel %vm631, %v1145, %v1147
      %v1149 = vrot.slane %v1046, 3
      %v1150 = vsel %vm631, %v1147, %v1149
      %v1151 = vrot.slane %v1048, 3
      %v1152 = vsel %vm631, %v1149, %v1151
      %v1153 = vrot.slane %v1049, 3
      %v1154 = vsel %vm631, %v1151, %v1153
      %v1155 = vsel %vm631, %v1153, %v1140
      %1156 = vrot.lane.b32.xlu0 %v1142, 24
      %v1157 = vpop.permute.xlu0 %1156
      %1158 = vrot.lane.b32.xlu0 %v1144, 24
      %v1159 = vpop.permute.xlu0 %1158
      %1160 = vrot.lane.b32.xlu0 %v1146, 24
      %v1161 = vpop.permute.xlu0 %1160
      %1162 = vrot.lane.b32.xlu0 %v1148, 24
      %v1163 = vpop.permute.xlu0 %1162
      %1164 = vrot.lane.b32.xlu0 %v1150, 24
      %v1165 = vpop.permute.xlu0 %1164
      %1166 = vrot.lane.b32.xlu0 %v1152, 24
      %v1167 = vpop.permute.xlu0 %1166
      %1168 = vrot.lane.b32.xlu0 %v1154, 24
      %v1169 = vpop.permute.xlu0 %1168
      %1170 = vrot.lane.b32.xlu0 %v1155, 24
      %v1171 = vpop.permute.xlu0 %1170
      %v1180 = vrot.slane %v1058, 4
      %v1181 = vrot.slane %v1038, 4
      %v1182 = vsel %vm712, %v1180, %v1181
      %v1183 = vrot.slane %v1040, 4
      %v1184 = vsel %vm712, %v1181, %v1183
      %v1185 = vrot.slane %v1042, 4
      %v1186 = vsel %vm712, %v1183, %v1185
      %v1187 = vrot.slane %v1044, 4
      %v1188 = vsel %vm712, %v1185, %v1187
      %v1189 = vrot.slane %v1046, 4
      %v1190 = vsel %vm712, %v1187, %v1189
      %v1191 = vrot.slane %v1048, 4
      %v1192 = vsel %vm712, %v1189, %v1191
      %v1193 = vrot.slane %v1049, 4
      %v1194 = vsel %vm712, %v1191, %v1193
      %v1195 = vsel %vm712, %v1193, %v1180
      %1196 = vrot.lane.b32.xlu0 %v1182, 32
      %v1197 = vpop.permute.xlu0 %1196
      %1198 = vrot.lane.b32.xlu0 %v1184, 32
      %v1199 = vpop.permute.xlu0 %1198
      %1200 = vrot.lane.b32.xlu0 %v1186, 32
      %v1201 = vpop.permute.xlu0 %1200
      %1202 = vrot.lane.b32.xlu0 %v1188, 32
      %v1203 = vpop.permute.xlu0 %1202
      %1204 = vrot.lane.b32.xlu0 %v1190, 32
      %v1205 = vpop.permute.xlu0 %1204
      %1206 = vrot.lane.b32.xlu0 %v1192, 32
      %v1207 = vpop.permute.xlu0 %1206
      %1208 = vrot.lane.b32.xlu0 %v1194, 32
      %v1209 = vpop.permute.xlu0 %1208
      %1210 = vrot.lane.b32.xlu0 %v1195, 32
      %v1211 = vpop.permute.xlu0 %1210
      %v1220 = vsel %vm970, %v1058, %v1077
      %v1221 = vsel %vm970, %v1038, %v1079
      %v1222 = vsel %vm970, %v1040, %v1081
      %v1223 = vsel %vm970, %v1042, %v1083
      %v1224 = vsel %vm970, %v1044, %v1085
      %v1225 = vsel %vm970, %v1046, %v1087
      %v1226 = vsel %vm970, %v1048, %v1089
      %v1227 = vsel %vm970, %v1049, %v1091
      %vm1228 = vcmask 130048
      %v1229 = vsel %vm1228, %v1220, %v1117
      %v1230 = vsel %vm1228, %v1221, %v1119
      %v1231 = vsel %vm1228, %v1222, %v1121
      %v1232 = vsel %vm1228, %v1223, %v1123
      %v1233 = vsel %vm1228, %v1224, %v1125
      %v1234 = vsel %vm1228, %v1225, %v1127
      %v1235 = vsel %vm1228, %v1226, %v1129
      %v1236 = vsel %vm1228, %v1227, %v1131
      %vm1237 = vcmask 195584
      %v1238 = vsel %vm1237, %v1229, %v1157
      %v1239 = vsel %vm1237, %v1230, %v1159
      %v1240 = vsel %vm1237, %v1231, %v1161
      %v1241 = vsel %vm1237, %v1232, %v1163
      %v1242 = vsel %vm1237, %v1233, %v1165
      %v1243 = vsel %vm1237, %v1234, %v1167
      %v1244 = vsel %vm1237, %v1235, %v1169
      %v1245 = vsel %vm1237, %v1236, %v1171
      %vm1246 = vcmask 261120
      %v1247 = vsel %vm1246, %v1238, %v1197
      %v1248 = vsel %vm1246, %v1239, %v1199
      %v1249 = vsel %vm1246, %v1240, %v1201
      %v1250 = vsel %vm1246, %v1241, %v1203
      %v1251 = vsel %vm1246, %v1242, %v1205
      %v1252 = vsel %vm1246, %v1243, %v1207
      %v1253 = vsel %vm1246, %v1244, %v1209
      %v1254 = vsel %vm1246, %v1245, %v1211
      %v1255 = vpack.c.bf16 %v1248, %v1247
      %v1256 = vpack.c.bf16 %v1250, %v1249
      %v1257 = vpack.c.bf16 %v1252, %v1251
      %v1258 = vpack.c.bf16 %v1254, %v1253
      %v1259 = vld [vmem:[%s3] sm:$0xf]
      %v1260 = vld [vmem:[%s3 + $0x4] sm:$0xf]
      %v1261 = vld [vmem:[%s3 + $0x8] sm:$0xf]
      %v1262 = vld [vmem:[%s3 + $0xc] sm:$0xf]
      %v1263 = vld [vmem:[%s3 + $0x10] sm:$0xf]
      %v1264 = vld [vmem:[%s4] sm:$0x1]
      %v1266 = vperm.slane %v1264, 0
      %v1273 = vunpack.c.l.b16 %v1259
      %v1274 = vunpack.c.l.b16 %v1260
      %v1275 = vunpack.c.l.b16 %v1261
      %v1276 = vunpack.c.l.b16 %v1262
      %v1277 = vunpack.c.l.b16 %v1263
      %v1278 = vpack.c.b16 %v1274, %v1273
      %v1279 = vpack.c.b16 %v1276, %v1275
      %v1280 = vpack.c.b16 %v1277, %v1277
      %vm1283 = vcmask 326656
      %v1285 = vsel %vm1283, %v1255, 0
      %v1288 = vsel %vm1283, %v1256, 0
      %v1291 = vsel %vm1283, %v1257, 0
      %v1294 = vsel %vm1283, %v1258, 0
      %v1297 = vsel %vm712, %v1280, 0
      %1299 = vmatpush.bf16.msra.mxu0 0
      %1300 = vmatpush.bf16.msra.mxu0 0
      %1301 = vmatpush.bf16.msra.mxu0 0
      %1302 = vmatpush.bf16.msra.mxu0 0
      %1303 = vmatpush.bf16.msra.mxu0 0
      %1304 = vmatpush.bf16.msra.mxu0 %v1297
      %1305 = vmatpush.bf16.msra.mxu0 %v1279
      %1306 = vmatpush.bf16.msra.mxu0 %v1278
      %1307 = vmatmul.bf16.gmra.mxu0 %v1285
      %v1308 = vpop.f32.mrf.mxu0
      %v1309 = vadd.f32 %v1266, %v1308
      %v1310 = vpop.f32.mrf.mxu0
      %v1311 = vadd.f32 %v1266, %v1310
      %1312 = vmatmul.bf16.gmra.mxu0 %v1288
      %v1313 = vpop.f32.mrf.mxu0
      %v1314 = vadd.f32 %v1266, %v1313
      %v1315 = vpop.f32.mrf.mxu0
      %v1316 = vadd.f32 %v1266, %v1315
      %1317 = vmatmul.bf16.gmra.mxu0 %v1291
      %v1318 = vpop.f32.mrf.mxu0
      %v1319 = vadd.f32 %v1266, %v1318
      %v1320 = vpop.f32.mrf.mxu0
      %v1321 = vadd.f32 %v1266, %v1320
      %1322 = vmatmul.bf16.gmra.mxu0 %v1294
      %v1323 = vpop.f32.mrf.mxu0
      %v1324 = vadd.f32 %v1266, %v1323
      %v1325 = vpop.f32.mrf.mxu0
      %v1326 = vadd.f32 %v1266, %v1325
      %1327 = vdwg.mxu0
      %v1328 = vmax.f32 %v1309, 0.0
      %v1329 = vmax.f32 %v1311, 0.0
      %v1330 = vmax.f32 %v1314, 0.0
      %v1331 = vmax.f32 %v1316, 0.0
      %v1332 = vmax.f32 %v1319, 0.0
      %v1333 = vmax.f32 %v1321, 0.0
      %v1334 = vmax.f32 %v1324, 0.0
      %v1335 = vmax.f32 %v1326, 0.0
      %1336 = vst.msk [vmem:[#allocation3] sm:$0xff] %vm1228, %v1328
      %1337 = vst.msk [vmem:[#allocation3 + $0x8] sm:$0xff] %vm1228, %v1329
      %1338 = vst.msk [vmem:[#allocation3 + $0x10] sm:$0xff] %vm1228, %v1330
      %1339 = vst.msk [vmem:[#allocation3 + $0x18] sm:$0xff] %vm1228, %v1331
      %1340 = vst.msk [vmem:[#allocation3 + $0x20] sm:$0xff] %vm1228, %v1332
      %1341 = vst.msk [vmem:[#allocation3 + $0x28] sm:$0xff] %vm1228, %v1333
      %1342 = vst.msk [vmem:[#allocation3 + $0x30] sm:$0xff] %vm1228, %v1334
      %1343 = vst.msk [vmem:[#allocation3 + $0x38] sm:$0xff] %vm1228, %v1335
      %v1344 = vld [vmem:[#allocation3] ss:$4 sm:$0xff]
      %s1345 = scalar_lea.vmem [#allocation3], 32
      %v1346 = vld [vmem:[%s1345] ss:$4 sm:$0xff]
      %s1347 = scalar_lea.vmem [#allocation3], 1
      %v1348 = vld [vmem:[%s1347] ss:$4 sm:$0xff]
      %s1349 = scalar_lea.vmem [#allocation3], 33
      %v1350 = vld [vmem:[%s1349] ss:$4 sm:$0xff]
      %v1351 = vmax.f32 %v1344, %v1348
      %v1352 = vmax.f32 %v1346, %v1350
      %s1353 = scalar_lea.vmem [#allocation3], 2
      %v1354 = vld [vmem:[%s1353] ss:$4 sm:$0xff]
      %s1355 = scalar_lea.vmem [#allocation3], 34
      %v1356 = vld [vmem:[%s1355] ss:$4 sm:$0xff]
      %v1357 = vmax.f32 %v1351, %v1354
      %v1358 = vmax.f32 %v1352, %v1356
      %s1359 = scalar_lea.vmem [#allocation3], 3
      %v1360 = vld [vmem:[%s1359] ss:$4 sm:$0xff]
      %s1361 = scalar_lea.vmem [#allocation3], 35
      %v1362 = vld [vmem:[%s1361] ss:$4 sm:$0xff]
      %v1363 = vmax.f32 %v1357, %v1360
      %v1364 = vmax.f32 %v1358, %v1362
      %v1366 = vrot.slane %v1364, 6
      %v1369 = vrot.slane %v1363, 6
      %v1370 = vsel %vm420, %v1369, %v1366
      %v1373 = vsel %vm420, %v1366, %v1369
      %v1375 = vrot.slane %v1373, 1
      %v1376 = vrot.slane %v1370, 1
      %v1377 = vsel %vm469, %v1375, %v1376
      %v1378 = vsel %vm469, %v1376, %v1375
      %1379 = vrot.lane.b32.xlu0 %v1377, 16
      %v1380 = vpop.permute.xlu0 %1379
      %1381 = vrot.lane.b32.xlu0 %v1378, 16
      %v1382 = vpop.permute.xlu0 %1381
      %v1385 = vrot.slane %v1373, 2
      %v1386 = vrot.slane %v1370, 2
      %v1387 = vsel %vm550, %v1385, %v1386
      %v1388 = vsel %vm550, %v1386, %v1385
      %1389 = vrot.lane.b32.xlu0 %v1387, 32
      %v1390 = vpop.permute.xlu0 %1389
      %1391 = vrot.lane.b32.xlu0 %v1388, 32
      %v1392 = vpop.permute.xlu0 %1391
      %v1395 = vrot.slane %v1373, 3
      %v1396 = vrot.slane %v1370, 3
      %v1397 = vsel %vm631, %v1395, %v1396
      %v1398 = vsel %vm631, %v1396, %v1395
      %1399 = vrot.lane.b32.xlu0 %v1397, 48
      %v1400 = vpop.permute.xlu0 %1399
      %1401 = vrot.lane.b32.xlu0 %v1398, 48
      %v1402 = vpop.permute.xlu0 %1401
      %v1405 = vrot.slane %v1373, 4
      %v1406 = vrot.slane %v1370, 4
      %v1407 = vsel %vm712, %v1405, %v1406
      %v1408 = vsel %vm712, %v1406, %v1405
      %1409 = vrot.lane.b32.xlu0 %v1407, 64
      %v1410 = vpop.permute.xlu0 %1409
      %1411 = vrot.lane.b32.xlu0 %v1408, 64
      %v1412 = vpop.permute.xlu0 %1411
      %v1415 = vsel %vm1228, %v1373, %v1380
      %v1416 = vsel %vm1228, %v1370, %v1382
      %v1417 = vsel %vm1246, %v1415, %v1390
      %v1418 = vsel %vm1246, %v1416, %v1392
      %vm1419 = vcmask 392192
      %v1420 = vsel %vm1419, %v1417, %v1400
      %v1421 = vsel %vm1419, %v1418, %v1402
      %vm1422 = vcmask 523264
      %v1423 = vsel %vm1422, %v1420, %v1410
      %v1424 = vsel %vm1422, %v1421, %v1412
      %v1425 = vpack.c.bf16 %v1424, %v1423
      %v1426 = vld [vmem:[%s5] sm:$0xf]
      %v1427 = vld [vmem:[%s5 + $0x4] sm:$0xf]
      %v1428 = vld [vmem:[%s5 + $0x8] sm:$0xf]
      %v1429 = vld [vmem:[%s5 + $0xc] sm:$0xf]
      %v1430 = vld [vmem:[%s5 + $0x10] sm:$0xf]
      %v1431 = vld [vmem:[%s5 + $0x14] sm:$0xf]
      %v1432 = vld [vmem:[%s5 + $0x18] sm:$0xf]
      %v1433 = vld [vmem:[%s5 + $0x1c] sm:$0xf]
      %v1434 = vld [vmem:[%s5 + $0x20] sm:$0xf]
      %v1435 = vld [vmem:[%s5 + $0x24] sm:$0xf]
      %v1436 = vld [vmem:[%s6] sm:$0x1]
      %v1438 = vperm.slane %v1436, 0
      %v1450 = vunpack.c.l.b16 %v1426
      %v1451 = vunpack.c.l.b16 %v1427
      %v1452 = vunpack.c.l.b16 %v1428
      %v1453 = vunpack.c.l.b16 %v1429
      %v1454 = vunpack.c.l.b16 %v1430
      %v1455 = vunpack.c.l.b16 %v1431
      %v1456 = vunpack.c.l.b16 %v1432
      %v1457 = vunpack.c.l.b16 %v1433
      %v1458 = vunpack.c.l.b16 %v1434
      %v1459 = vunpack.c.l.b16 %v1435
      %v1460 = vpack.c.b16 %v1451, %v1450
      %v1461 = vpack.c.b16 %v1453, %v1452
      %v1462 = vpack.c.b16 %v1455, %v1454
      %v1463 = vpack.c.b16 %v1457, %v1456
      %v1464 = vpack.c.b16 %v1459, %v1458
      %vm1470 = vcmask 654336
      %v1472 = vsel %vm1470, %v1425, 0
      %1474 = vmatpush.bf16.msra.mxu0 0
      %1475 = vmatpush.bf16.msra.mxu0 0
      %1476 = vmatpush.bf16.msra.mxu0 0
      %1477 = vmatpush.bf16.msra.mxu0 %v1464
      %1478 = vmatpush.bf16.msra.mxu0 %v1463
      %1479 = vmatpush.bf16.msra.mxu0 %v1462
      %1480 = vmatpush.bf16.msra.mxu0 %v1461
      %1481 = vmatpush.bf16.msra.mxu0 %v1460
      %1482 = vmatmul.bf16.gmra.mxu0 %v1472
      %v1483 = vpop.f32.mrf.mxu0
      %v1484 = vadd.f32 %v1438, %v1483
      %v1485 = vpop.f32.mrf.mxu0
      %v1486 = vadd.f32 %v1438, %v1485
      %1487 = vdwg.mxu0
      %v1488 = vmax.f32 %v1484, 0.0
      %v1489 = vmax.f32 %v1486, 0.0
      %1490 = vst.msk [vmem:[#allocation4] sm:$0xff] %vm1246, %v1488
      %1491 = vst.msk [vmem:[#allocation4 + $0x8] sm:$0xff] %vm1246, %v1489
      %v1492 = vld [vmem:[#allocation4] ss:$4 sm:$0xf]
      %s1493 = scalar_lea.vmem [#allocation4], 1
      %v1494 = vld [vmem:[%s1493] ss:$4 sm:$0xf]
      %v1495 = vmax.f32 %v1492, %v1494
      %s1496 = scalar_lea.vmem [#allocation4], 2
      %v1497 = vld [vmem:[%s1496] ss:$4 sm:$0xf]
      %v1498 = vmax.f32 %v1495, %v1497
      %s1499 = scalar_lea.vmem [#allocation4], 3
      %v1500 = vld [vmem:[%s1499] ss:$4 sm:$0xf]
      %v1501 = vmax.f32 %v1498, %v1500
      %v1503 = vrot.slane %v1501, 1
      %1504 = vrot.lane.b32.xlu0 %v1503, 32
      %v1505 = vpop.permute.xlu0 %1504
      %v1507 = vrot.slane %v1501, 2
      %1508 = vrot.lane.b32.xlu0 %v1507, 64
      %v1509 = vpop.permute.xlu0 %1508
      %v1511 = vrot.slane %v1501, 3
      %1512 = vrot.lane.b32.xlu0 %v1511, 96
      %v1513 = vpop.permute.xlu0 %1512
      %v1515 = vsel %vm1246, %v1501, %v1505
      %v1516 = vsel %vm1422, %v1515, %v1509
      %vm1517 = vcmask 785408
      %v1518 = vsel %vm1517, %v1516, %v1513
      %v1519 = vpack.c.bf16 %v1518, %v1518
      %v1520 = vld [vmem:[%s7] sm:$0xf]
      %v1521 = vld [vmem:[%s7 + $0x4] sm:$0xf]
      %v1522 = vld [vmem:[%s7 + $0x8] sm:$0xf]
      %v1523 = vld [vmem:[%s7 + $0xc] sm:$0xf]
      %v1524 = vld [vmem:[%s7 + $0x10] sm:$0xf]
      %v1525 = vld [vmem:[%s7 + $0x14] sm:$0xf]
      %v1526 = vld [vmem:[%s7 + $0x18] sm:$0xf]
      %v1527 = vld [vmem:[%s7 + $0x1c] sm:$0xf]
      %v1528 = vld [vmem:[%s7 + $0x20] sm:$0xf]
      %v1529 = vld [vmem:[%s7 + $0x24] sm:$0xf]
      %v1530 = vld [vmem:[%s7 + $0x28] sm:$0xf]
      %v1531 = vld [vmem:[%s7 + $0x2c] sm:$0xf]
      %v1532 = vld [vmem:[%s7 + $0x30] sm:$0xf]
      %v1533 = vld [vmem:[%s7 + $0x34] sm:$0xf]
      %v1534 = vld [vmem:[%s7 + $0x38] sm:$0xf]
      %v1535 = vld [vmem:[%s7 + $0x3c] sm:$0xf]
      %v1536 = vld [vmem:[%s8] sm:$0x1]
      %v1553 = vunpack.c.l.b16 %v1520
      %v1554 = vunpack.c.l.b16 %v1521
      %v1555 = vunpack.c.l.b16 %v1522
      %v1556 = vunpack.c.l.b16 %v1523
      %v1557 = vunpack.c.l.b16 %v1524
      %v1558 = vunpack.c.l.b16 %v1525
      %v1559 = vunpack.c.l.b16 %v1526
      %v1560 = vunpack.c.l.b16 %v1527
      %v1561 = vunpack.c.l.b16 %v1528
      %v1562 = vunpack.c.l.b16 %v1529
      %v1563 = vunpack.c.l.b16 %v1530
      %v1564 = vunpack.c.l.b16 %v1531
      %v1565 = vunpack.c.l.b16 %v1532
      %v1566 = vunpack.c.l.b16 %v1533
      %v1567 = vunpack.c.l.b16 %v1534
      %v1568 = vunpack.c.l.b16 %v1535
      %v1569 = vpack.c.b16 %v1554, %v1553
      %v1570 = vpack.c.b16 %v1556, %v1555
      %v1571 = vpack.c.b16 %v1558, %v1557
      %v1572 = vpack.c.b16 %v1560, %v1559
      %v1573 = vpack.c.b16 %v1562, %v1561
      %v1574 = vpack.c.b16 %v1564, %v1563
      %v1575 = vpack.c.b16 %v1566, %v1565
      %v1576 = vpack.c.b16 %v1568, %v1567
      %1585 = vmatpush.bf16.msra.mxu0 %v1576
      %1586 = vmatpush.bf16.msra.mxu0 %v1575
      %1587 = vmatpush.bf16.msra.mxu0 %v1574
      %1588 = vmatpush.bf16.msra.mxu0 %v1573
      %1589 = vmatpush.bf16.msra.mxu0 %v1572
      %1590 = vmatpush.bf16.msra.mxu0 %v1571
      %1591 = vmatpush.bf16.msra.mxu0 %v1570
      %1592 = vmatpush.bf16.msra.mxu0 %v1569
      %1593 = vmatmul.bf16.gmra.mxu0 %v1519
      %v1594 = vpop.f32.mrf.mxu0
      %v1595 = vadd.f32 %v1536, %v1594
      %v1596 = vpop.f32.mrf.mxu0
      %1597 = vdwg.mxu0
      %v1598 = vmax.f32 %v1595, 0.0
      %v1599 = vpack.c.bf16 %v1598, %v1598
      %v1600 = vld [vmem:[%s9] sm:$0xf]
      %v1601 = vld [vmem:[%s9 + $0x4] sm:$0xf]
      %v1602 = vld [vmem:[%s9 + $0x8] sm:$0xf]
      %v1603 = vld [vmem:[%s9 + $0xc] sm:$0xf]
      %v1604 = vld [vmem:[%s9 + $0x10] sm:$0xf]
      %v1605 = vld [vmem:[#allocation5] sm:$0x1]
      %v1611 = vunpack.c.l.b16 %v1600
      %v1612 = vunpack.c.l.b16 %v1601
      %v1613 = vunpack.c.l.b16 %v1602
      %v1614 = vunpack.c.l.b16 %v1603
      %v1615 = vunpack.c.l.b16 %v1604
      %v1616 = vpack.c.b16 %v1612, %v1611
      %v1617 = vpack.c.b16 %v1614, %v1613
      %v1618 = vpack.c.b16 %v1615, %v1615
      %v1622 = vsel %vm1283, %v1599, 0
      %v1625 = vsel %vm712, %v1618, 0
      %1627 = vmatpush.bf16.msra.mxu0 0
      %1628 = vmatpush.bf16.msra.mxu0 0
      %1629 = vmatpush.bf16.msra.mxu0 0
      %1630 = vmatpush.bf16.msra.mxu0 0
      %1631 = vmatpush.bf16.msra.mxu0 0
      %1632 = vmatpush.bf16.msra.mxu0 %v1625
      %1633 = vmatpush.bf16.msra.mxu0 %v1617
      %1634 = vmatpush.bf16.msra.mxu0 %v1616
      %1635 = vmatmul.bf16.gmra.mxu0 %v1622
      %v1636 = vpop.f32.mrf.mxu0
      %v1637 = vadd.f32 %v1605, %v1636
      %v1638 = vpop.f32.mrf.mxu0
      %1639 = vdwg.mxu0
      %v1640 = vmax.f32 %v1637, 0.0
      %vm1641 = vcmask 0
      %1642 = vst.msk [vmem:[%s384] sm:$0x1] %vm1641, %v1640
      %p1643 = scmp.lt.s32.totalorder %s24, 1
      %s1644 = scalar_select %p1643, %s24, 1
      %s1645 = scalar_lea.vmem %s11, %s1644
      // Predicated region
      $region65: #{tpu_custom_call.1} parent=63 // pred_check
        %p1646 = pneg %p278
      $region66: #{tpu_custom_call.1} parent=63 // pred_check_branch
        %1648 = sbr.rel (%p1646) target = $region68
      $region67: #{tpu_custom_call.1} parent=63 // pred_region
        _
      $region68: #{tpu_custom_call.1} parent=63 // pred_fallthru
        _
    $region64: #{tpu_custom_call.1} parent=5 // pred_fallthru
      _
    %p1649 = scmp.le.s32.totalorder 2, %s19
    // Predicated region
    $region69: #{tpu_custom_call.1} parent=5 // pred_check
      %p1650 = pneg %p1649
    $region70: #{tpu_custom_call.1} parent=5 // pred_check_branch
      %1652 = sbr.rel (%p1650) target = $region72
    $region71: #{tpu_custom_call.1} parent=5 // pred_region
      %s1653 = ssub.s32 %s19, 2
      // Predicated region
      $region73: #{tpu_custom_call.1} parent=71 // pred_check
        %p1654 = pneg %p284
      $region74: #{tpu_custom_call.1} parent=71 // pred_check_branch
        %1656 = sbr.rel (%p1654) target = $region76
      $region75: #{tpu_custom_call.1} parent=71 // pred_region
        %p1657 = scmp.lt.s32.totalorder %s25, 1
        %s1658 = scalar_select %p1657, %s25, 1
        %s1659 = scalar_lea.vmem %s11, %s1658
      $region76: #{tpu_custom_call.1} parent=71 // pred_fallthru
        _
    $region72: #{tpu_custom_call.1} parent=5 // pred_fallthru
      _
  $region6: #{tpu_custom_call.1} parent=0 // loop_footer
    %s23 = sadd.s32 1, %s19
  $region7: #{tpu_custom_call.1} parent=0 // loop_footer_branch
    %18 = sbr.rel target = $region3
  $region8: #{tpu_custom_call.1} parent=0 // loop_exit
    _

</llo_original>
